<compile_context>
chip_gen: v5e
topology: v5e:2x2
jax: 0.10.0
libtpu: 0.0.40
codegen_flags: <defaults>
</compile_context>

<pallas_src>
import numpy as np
import jax
import jax.numpy as jnp
from jax.experimental import pallas as pl
from jax.experimental.pallas import tpu as pltpu

NUM_ACTIONS = 4          # env.action_space.n is external; fixed deterministically here
HW = 4                   # spatial height / width (x.view(-1, 4, 4, 18))
P = HW * HW              # 16 spatial positions
CIN = 18
C = 64
K = 3
NTAP = K * K


def _boundary_masks(bt):
    """(P*bt, NTAP) f32 validity masks for the 3x3 taps (compile-time constant).

    Row r = p*bt + b, p = 4*i + j.  mask[r, t] == 1 iff the tap (di, dj) = (t//3,
    t%3) reads an in-bounds spatial neighbour of position p.  Every row whose
    pltpu.roll source wraps around the tile is geometrically invalid, so these
    masks also make the cyclic roll safe.
    """
    rows = np.arange(P * bt)
    p = rows // bt
    ii, jj = p // HW, p % HW
    m = np.empty((P * bt, NTAP), np.float32)
    for t in range(NTAP):
        di, dj = t // K, t % K
        si, sj = ii + di - 1, jj + dj - 1
        m[:, t] = ((si >= 0) & (si < HW) & (sj >= 0) & (sj < HW)).astype(np.float32)
    return m


def dqn_kernel(x_ref, m_ref, w1_ref, b1_ref, wc_ref, bc_ref,
               w2_ref, b2_ref, w3_ref, b3_ref, out_ref):
    rt = x_ref.shape[0]          # rows per tile = P * BT
    bt = out_ref.shape[0]        # batch tile

    # ---- fc1 over the feature dim (NOTE: no relu -> "NoFirstRelu") ----------
    h1 = jnp.dot(x_ref[...], w1_ref[...],
                 preferred_element_type=jnp.float32) + b1_ref[...]        # (RT, C)

    # ---- conv 3x3 pad=1: 9 accumulated matmuls (no im2col slab) --------------
    acc = jnp.zeros((rt, C), jnp.float32)
    for t in range(NTAP):
        di, dj = t // K, t % K
        off = ((di - 1) * HW + (dj - 1)) * bt          # static row offset of source
        if off == 0:
            tap = h1                                   # center tap: unshifted, unmasked
        else:
            tap = pltpu.roll(h1, (-off) % rt, axis=0)  # out[r] = h1[r + off] (wrap masked)
            tap = tap * m_ref[:, t:t + 1]              # precomputed boundary mask
        acc = acc + jnp.dot(tap.astype(jnp.bfloat16), wc_ref[t],
                            preferred_element_type=jnp.float32)
    h2 = jnp.maximum(acc + bc_ref[...], 0.0)                               # (RT, C)

    # ---- fc2 over flattened (h, w, c): 16 accumulated matmuls ----------------
    # out[b] = sum_p h2[p*BT + b, :] @ W2[p]   (matches permute(0,2,3,1).view(-1,1024))
    acc2 = jnp.zeros((bt, C), jnp.float32)
    for p in range(P):
        blk = h2[p * bt:(p + 1) * bt, :].astype(jnp.bfloat16)
        acc2 = acc2 + jnp.dot(blk, w2_ref[p], preferred_element_type=jnp.float32)
    h3 = jnp.maximum(acc2 + b2_ref[...], 0.0)                              # (BT, C)

    # ---- output head + softmax(dim=-1) ---------------------------------------
    logits = jnp.dot(h3, w3_ref[...],
                     preferred_element_type=jnp.float32) + b3_ref[...]     # (BT, A)
    m = jnp.max(logits, axis=-1, keepdims=True)
    e = jnp.exp(logits - m)
    s = jnp.sum(e, axis=-1, keepdims=True)
    out_ref[...] = e * pl.reciprocal(s, approx=True)


@jax.jit
def cnn_net_no_first_relu(x, params):
    w1, b1, wc, bc, w2r, b2, w3, b3 = params
    B = x.shape[0]
    # Batch tile: 16 batches -> 256 rows/tile fills the v6e/v7x MXU; otherwise
    # fall back to a single tile (still correct, just smaller M).
    BT = 16 if B % 16 == 0 else B
    nt = B // BT
    RT = P * BT

    # glue: x.view(-1, 4, 4, 18); rows p-major within each batch tile.
    x_pm = x.reshape(nt, BT, P, CIN).transpose(0, 2, 1, 3).reshape(nt * RT, CIN)
    masks = jnp.asarray(_boundary_masks(BT))           # compile-time constant, tiny
    wc_bf = wc.astype(jnp.bfloat16)                    # (9, 64, 64)  tap-major (in, out)
    w2_bf = w2r.astype(jnp.bfloat16)                   # (16, 64, 64) position-major (in, out)

    return pl.pallas_call(
        dqn_kernel,
        out_shape=jax.ShapeDtypeStruct((B, NUM_ACTIONS), jnp.float32),
        grid=(nt,),
        in_specs=[
            pl.BlockSpec((RT, CIN), lambda i: (i, 0)),            # x tile
            pl.BlockSpec((RT, NTAP), lambda i: (0, 0)),           # boundary masks
            pl.BlockSpec((CIN, C), lambda i: (0, 0)),             # fc1 W
            pl.BlockSpec((1, C), lambda i: (0, 0)),               # fc1 b
            pl.BlockSpec((NTAP, C, C), lambda i: (0, 0, 0)),      # conv W (bf16)
            pl.BlockSpec((1, C), lambda i: (0, 0)),               # conv b
            pl.BlockSpec((P, C, C), lambda i: (0, 0, 0)),         # fc2 W (bf16)
            pl.BlockSpec((1, C), lambda i: (0, 0)),               # fc2 b
            pl.BlockSpec((C, NUM_ACTIONS), lambda i: (0, 0)),     # out W
            pl.BlockSpec((1, NUM_ACTIONS), lambda i: (0, 0)),     # out b
        ],
        out_specs=pl.BlockSpec((BT, NUM_ACTIONS), lambda i: (i, 0)),
        compiler_params=pltpu.CompilerParams(
            dimension_semantics=("parallel",)),                   # v7x: 2 TCs at large B
    )(x_pm, masks, w1, b1.reshape(1, C), wc_bf, bc.reshape(1, C),
      w2_bf, b2.reshape(1, C), w3, b3.reshape(1, NUM_ACTIONS))


def reference(x, params):
    """Pure-JAX f32 reference matching the PyTorch forward semantics."""
    w1, b1, wc, bc, w2r, b2, w3, b3 = params
    hi = jax.lax.Precision.HIGHEST
    Bx = x.shape[0]
    xb = x.reshape(Bx, HW, HW, CIN)
    h1 = jnp.dot(xb, w1, precision=hi) + b1                                # (B,4,4,64)
    h1p = jnp.pad(h1, ((0, 0), (1, 1), (1, 1), (0, 0)))
    conv = jnp.broadcast_to(bc, (Bx, HW, HW, C)).astype(jnp.float32)
    for di in range(K):
        for dj in range(K):
            t = di * K + dj
            conv = conv + jnp.dot(h1p[:, di:di + HW, dj:dj + HW, :], wc[t],
                                  precision=hi)
    h2 = jax.nn.relu(conv.reshape(Bx, P * C))
    h3 = jax.nn.relu(jnp.dot(h2, w2r.reshape(P * C, C), precision=hi) + b2)
    logits = jnp.dot(h3, w3, precision=hi) + b3
    return jax.nn.softmax(logits, axis=-1)


if __name__ == "__main__":
    key = jax.random.PRNGKey(0)
    ks = jax.random.split(key, 9)
    # deterministic synthetic parameters (module init shapes: fc1 18->64,
    # conv 64->64 3x3 pad=1, fc2 1024->64, out 64->NUM_ACTIONS)
    w1 = 0.1 * jax.random.normal(ks[0], (CIN, C), jnp.float32)       # fc1.weight.T
    b1 = 0.1 * jax.random.normal(ks[1], (C,), jnp.float32)
    wc = 0.05 * jax.random.normal(ks[2], (NTAP, C, C), jnp.float32)  # conv taps (in,out)
    bc = 0.1 * jax.random.normal(ks[3], (C,), jnp.float32)
    w2r = 0.02 * jax.random.normal(ks[4], (P, C, C), jnp.float32)    # fc2.weight.T per p
    b2 = 0.1 * jax.random.normal(ks[5], (C,), jnp.float32)
    w3 = 0.1 * jax.random.normal(ks[6], (C, NUM_ACTIONS), jnp.float32)
    b3 = 0.1 * jax.random.normal(ks[7], (NUM_ACTIONS,), jnp.float32)
    params = (w1, b1, wc, bc, w2r, b2, w3, b3)

    # small case (B=2, single tile, grid=(1,))
    x = jax.random.normal(ks[8], (2, HW * HW * CIN), jnp.float32)    # (2, 288)
    out = jax.block_until_ready(cnn_net_no_first_relu(x, params))
    ref = jax.block_until_ready(reference(x, params))
    np.testing.assert_allclose(np.asarray(out), np.asarray(ref), rtol=2e-3, atol=2e-3)
    assert out.shape == (2, NUM_ACTIONS)

    # batched case (B=32 -> BT=16, grid=(2,)) exercising the tiled / parallel path
    xb = jax.random.normal(jax.random.PRNGKey(1), (32, HW * HW * CIN), jnp.float32)
    outb = jax.block_until_ready(cnn_net_no_first_relu(xb, params))
    refb = jax.block_until_ready(reference(xb, params))
    np.testing.assert_allclose(np.asarray(outb), np.asarray(refb), rtol=2e-3, atol=2e-3)
    assert outb.shape == (32, NUM_ACTIONS)

    print("KERNEL_OK")
</pallas_src>

<mosaic_0001>
module attributes {stable_mosaic.version = 11 : i64} {
  func.func @dqn_kernel(%arg0: i32, %arg1: memref<32x18xf32, #tpu.memory_space<vmem>>, %arg2: memref<32x9xf32, #tpu.memory_space<vmem>>, %arg3: memref<18x64xf32, #tpu.memory_space<vmem>>, %arg4: memref<1x64xf32, #tpu.memory_space<vmem>>, %arg5: memref<9x64x64xbf16, #tpu.memory_space<vmem>>, %arg6: memref<1x64xf32, #tpu.memory_space<vmem>>, %arg7: memref<16x64x64xbf16, #tpu.memory_space<vmem>>, %arg8: memref<1x64xf32, #tpu.memory_space<vmem>>, %arg9: memref<64x4xf32, #tpu.memory_space<vmem>>, %arg10: memref<1x4xf32, #tpu.memory_space<vmem>>, %arg11: memref<2x4xf32, #tpu.memory_space<vmem>>) attributes {dimension_semantics = [#tpu.dimension_semantics<parallel>], iteration_bounds = array<i64: 1>, scalar_prefetch = 0 : i64, scratch_operands = 0 : i64, tpu.core_type = #tpu.core_type<tc>, window_params = [{transform_indices = @transform_0, window_bounds = array<i64: 32, 18>}, {pipeline_mode = #tpu.pipeline_mode<synchronous>, transform_indices = @transform_1, window_bounds = array<i64: 32, 9>}, {pipeline_mode = #tpu.pipeline_mode<synchronous>, transform_indices = @transform_2, window_bounds = array<i64: 18, 64>}, {pipeline_mode = #tpu.pipeline_mode<synchronous>, transform_indices = @transform_3, window_bounds = array<i64: 1, 64>}, {pipeline_mode = #tpu.pipeline_mode<synchronous>, transform_indices = @transform_4, window_bounds = array<i64: 9, 64, 64>}, {pipeline_mode = #tpu.pipeline_mode<synchronous>, transform_indices = @transform_5, window_bounds = array<i64: 1, 64>}, {pipeline_mode = #tpu.pipeline_mode<synchronous>, transform_indices = @transform_6, window_bounds = array<i64: 16, 64, 64>}, {pipeline_mode = #tpu.pipeline_mode<synchronous>, transform_indices = @transform_7, window_bounds = array<i64: 1, 64>}, {pipeline_mode = #tpu.pipeline_mode<synchronous>, transform_indices = @transform_8, window_bounds = array<i64: 64, 4>}, {pipeline_mode = #tpu.pipeline_mode<synchronous>, transform_indices = @transform_9, window_bounds = array<i64: 1, 4>}, {transform_indices = @transform_10, window_bounds = array<i64: 2, 4>}]} {
    %c0 = arith.constant 0 : index
    %c0_0 = arith.constant 0 : index
    %0 = vector.load %arg1[%c0, %c0_0] : memref<32x18xf32, #tpu.memory_space<vmem>>, vector<32x18xf32>
    %c0_1 = arith.constant 0 : index
    %c0_2 = arith.constant 0 : index
    %1 = vector.load %arg3[%c0_1, %c0_2] : memref<18x64xf32, #tpu.memory_space<vmem>>, vector<18x64xf32>
    %cst = arith.constant dense<0.000000e+00> : vector<32x64xf32>
    %2 = tpu.matmul %0, %1, %cst {dimension_numbers = #tpu.dot_dimension_numbers<[1], [0], [0], [1], [0, 0, 1, 1], [], []>} : vector<32x18xf32>, vector<18x64xf32>, vector<32x64xf32> -> vector<32x64xf32>
    %c0_3 = arith.constant 0 : index
    %c0_4 = arith.constant 0 : index
    %3 = vector.load %arg4[%c0_3, %c0_4] : memref<1x64xf32, #tpu.memory_space<vmem>>, vector<1x64xf32>
    %4 = vector.broadcast %3 : vector<1x64xf32> to vector<32x64xf32>
    %5 = arith.addf %2, %4 : vector<32x64xf32>
    %cst_5 = arith.constant 0.000000e+00 : f32
    %6 = vector.broadcast %cst_5 : f32 to vector<32x64xf32>
    %c10_i32 = arith.constant 10 : i32
    %7 = tpu.dynamic_rotate %5 by %c10_i32 dim 0 : vector<32x64xf32>, i32 -> vector<32x64xf32>
    %c0_6 = arith.constant 0 : index
    %c0_7 = arith.constant 0 : index
    %8 = vector.load %arg2[%c0_6, %c0_7] : memref<32x9xf32, #tpu.memory_space<vmem>>, vector<32x1xf32>
    %9 = vector.broadcast %8 : vector<32x1xf32> to vector<32x64xf32>
    %10 = arith.mulf %7, %9 : vector<32x64xf32>
    %11 = arith.truncf %10 : vector<32x64xf32> to vector<32x64xbf16>
    %c0_8 = arith.constant 0 : index
    %c0_9 = arith.constant 0 : index
    %c0_10 = arith.constant 0 : index
    %12 = vector.load %arg5[%c0_8, %c0_9, %c0_10] : memref<9x64x64xbf16, #tpu.memory_space<vmem>>, vector<1x64x64xbf16>
    %13 = vector.shape_cast %12 : vector<1x64x64xbf16> to vector<64x64xbf16>
    %cst_11 = arith.constant dense<0.000000e+00> : vector<32x64xf32>
    %14 = tpu.matmul %11, %13, %cst_11 {dimension_numbers = #tpu.dot_dimension_numbers<[1], [0], [0], [1], [0, 0, 1, 1], [], []>} : vector<32x64xbf16>, vector<64x64xbf16>, vector<32x64xf32> -> vector<32x64xf32>
    %15 = arith.addf %6, %14 : vector<32x64xf32>
    %c8_i32 = arith.constant 8 : i32
    %16 = tpu.dynamic_rotate %5 by %c8_i32 dim 0 : vector<32x64xf32>, i32 -> vector<32x64xf32>
    %c0_12 = arith.constant 0 : index
    %c1 = arith.constant 1 : index
    %17 = vector.load %arg2[%c0_12, %c1] : memref<32x9xf32, #tpu.memory_space<vmem>>, vector<32x1xf32>
    %18 = vector.broadcast %17 : vector<32x1xf32> to vector<32x64xf32>
    %19 = arith.mulf %16, %18 : vector<32x64xf32>
    %20 = arith.truncf %19 : vector<32x64xf32> to vector<32x64xbf16>
    %c1_13 = arith.constant 1 : index
    %c0_14 = arith.constant 0 : index
    %c0_15 = arith.constant 0 : index
    %21 = vector.load %arg5[%c1_13, %c0_14, %c0_15] : memref<9x64x64xbf16, #tpu.memory_space<vmem>>, vector<1x64x64xbf16>
    %22 = vector.shape_cast %21 : vector<1x64x64xbf16> to vector<64x64xbf16>
    %cst_16 = arith.constant dense<0.000000e+00> : vector<32x64xf32>
    %23 = tpu.matmul %20, %22, %cst_16 {dimension_numbers = #tpu.dot_dimension_numbers<[1], [0], [0], [1], [0, 0, 1, 1], [], []>} : vector<32x64xbf16>, vector<64x64xbf16>, vector<32x64xf32> -> vector<32x64xf32>
    %24 = arith.addf %15, %23 : vector<32x64xf32>
    %c6_i32 = arith.constant 6 : i32
    %25 = tpu.dynamic_rotate %5 by %c6_i32 dim 0 : vector<32x64xf32>, i32 -> vector<32x64xf32>
    %c0_17 = arith.constant 0 : index
    %c2 = arith.constant 2 : index
    %26 = vector.load %arg2[%c0_17, %c2] : memref<32x9xf32, #tpu.memory_space<vmem>>, vector<32x1xf32>
    %27 = vector.broadcast %26 : vector<32x1xf32> to vector<32x64xf32>
    %28 = arith.mulf %25, %27 : vector<32x64xf32>
    %29 = arith.truncf %28 : vector<32x64xf32> to vector<32x64xbf16>
    %c2_18 = arith.constant 2 : index
    %c0_19 = arith.constant 0 : index
    %c0_20 = arith.constant 0 : index
    %30 = vector.load %arg5[%c2_18, %c0_19, %c0_20] : memref<9x64x64xbf16, #tpu.memory_space<vmem>>, vector<1x64x64xbf16>
    %31 = vector.shape_cast %30 : vector<1x64x64xbf16> to vector<64x64xbf16>
    %cst_21 = arith.constant dense<0.000000e+00> : vector<32x64xf32>
    %32 = tpu.matmul %29, %31, %cst_21 {dimension_numbers = #tpu.dot_dimension_numbers<[1], [0], [0], [1], [0, 0, 1, 1], [], []>} : vector<32x64xbf16>, vector<64x64xbf16>, vector<32x64xf32> -> vector<32x64xf32>
    %33 = arith.addf %24, %32 : vector<32x64xf32>
    %c2_i32 = arith.constant 2 : i32
    %34 = tpu.dynamic_rotate %5 by %c2_i32 dim 0 : vector<32x64xf32>, i32 -> vector<32x64xf32>
    %c0_22 = arith.constant 0 : index
    %c3 = arith.constant 3 : index
    %35 = vector.load %arg2[%c0_22, %c3] : memref<32x9xf32, #tpu.memory_space<vmem>>, vector<32x1xf32>
    %36 = vector.broadcast %35 : vector<32x1xf32> to vector<32x64xf32>
    %37 = arith.mulf %34, %36 : vector<32x64xf32>
    %38 = arith.truncf %37 : vector<32x64xf32> to vector<32x64xbf16>
    %c3_23 = arith.constant 3 : index
    %c0_24 = arith.constant 0 : index
    %c0_25 = arith.constant 0 : index
    %39 = vector.load %arg5[%c3_23, %c0_24, %c0_25] : memref<9x64x64xbf16, #tpu.memory_space<vmem>>, vector<1x64x64xbf16>
    %40 = vector.shape_cast %39 : vector<1x64x64xbf16> to vector<64x64xbf16>
    %cst_26 = arith.constant dense<0.000000e+00> : vector<32x64xf32>
    %41 = tpu.matmul %38, %40, %cst_26 {dimension_numbers = #tpu.dot_dimension_numbers<[1], [0], [0], [1], [0, 0, 1, 1], [], []>} : vector<32x64xbf16>, vector<64x64xbf16>, vector<32x64xf32> -> vector<32x64xf32>
    %42 = arith.addf %33, %41 : vector<32x64xf32>
    %43 = arith.truncf %5 : vector<32x64xf32> to vector<32x64xbf16>
    %c4 = arith.constant 4 : index
    %c0_27 = arith.constant 0 : index
    %c0_28 = arith.constant 0 : index
    %44 = vector.load %arg5[%c4, %c0_27, %c0_28] : memref<9x64x64xbf16, #tpu.memory_space<vmem>>, vector<1x64x64xbf16>
    %45 = vector.shape_cast %44 : vector<1x64x64xbf16> to vector<64x64xbf16>
    %cst_29 = arith.constant dense<0.000000e+00> : vector<32x64xf32>
    %46 = tpu.matmul %43, %45, %cst_29 {dimension_numbers = #tpu.dot_dimension_numbers<[1], [0], [0], [1], [0, 0, 1, 1], [], []>} : vector<32x64xbf16>, vector<64x64xbf16>, vector<32x64xf32> -> vector<32x64xf32>
    %47 = arith.addf %42, %46 : vector<32x64xf32>
    %c30_i32 = arith.constant 30 : i32
    %48 = tpu.dynamic_rotate %5 by %c30_i32 dim 0 : vector<32x64xf32>, i32 -> vector<32x64xf32>
    %c0_30 = arith.constant 0 : index
    %c5 = arith.constant 5 : index
    %49 = vector.load %arg2[%c0_30, %c5] : memref<32x9xf32, #tpu.memory_space<vmem>>, vector<32x1xf32>
    %50 = vector.broadcast %49 : vector<32x1xf32> to vector<32x64xf32>
    %51 = arith.mulf %48, %50 : vector<32x64xf32>
    %52 = arith.truncf %51 : vector<32x64xf32> to vector<32x64xbf16>
    %c5_31 = arith.constant 5 : index
    %c0_32 = arith.constant 0 : index
    %c0_33 = arith.constant 0 : index
    %53 = vector.load %arg5[%c5_31, %c0_32, %c0_33] : memref<9x64x64xbf16, #tpu.memory_space<vmem>>, vector<1x64x64xbf16>
    %54 = vector.shape_cast %53 : vector<1x64x64xbf16> to vector<64x64xbf16>
    %cst_34 = arith.constant dense<0.000000e+00> : vector<32x64xf32>
    %55 = tpu.matmul %52, %54, %cst_34 {dimension_numbers = #tpu.dot_dimension_numbers<[1], [0], [0], [1], [0, 0, 1, 1], [], []>} : vector<32x64xbf16>, vector<64x64xbf16>, vector<32x64xf32> -> vector<32x64xf32>
    %56 = arith.addf %47, %55 : vector<32x64xf32>
    %c26_i32 = arith.constant 26 : i32
    %57 = tpu.dynamic_rotate %5 by %c26_i32 dim 0 : vector<32x64xf32>, i32 -> vector<32x64xf32>
    %c0_35 = arith.constant 0 : index
    %c6 = arith.constant 6 : index
    %58 = vector.load %arg2[%c0_35, %c6] : memref<32x9xf32, #tpu.memory_space<vmem>>, vector<32x1xf32>
    %59 = vector.broadcast %58 : vector<32x1xf32> to vector<32x64xf32>
    %60 = arith.mulf %57, %59 : vector<32x64xf32>
    %61 = arith.truncf %60 : vector<32x64xf32> to vector<32x64xbf16>
    %c6_36 = arith.constant 6 : index
    %c0_37 = arith.constant 0 : index
    %c0_38 = arith.constant 0 : index
    %62 = vector.load %arg5[%c6_36, %c0_37, %c0_38] : memref<9x64x64xbf16, #tpu.memory_space<vmem>>, vector<1x64x64xbf16>
    %63 = vector.shape_cast %62 : vector<1x64x64xbf16> to vector<64x64xbf16>
    %cst_39 = arith.constant dense<0.000000e+00> : vector<32x64xf32>
    %64 = tpu.matmul %61, %63, %cst_39 {dimension_numbers = #tpu.dot_dimension_numbers<[1], [0], [0], [1], [0, 0, 1, 1], [], []>} : vector<32x64xbf16>, vector<64x64xbf16>, vector<32x64xf32> -> vector<32x64xf32>
    %65 = arith.addf %56, %64 : vector<32x64xf32>
    %c24_i32 = arith.constant 24 : i32
    %66 = tpu.dynamic_rotate %5 by %c24_i32 dim 0 : vector<32x64xf32>, i32 -> vector<32x64xf32>
    %c0_40 = arith.constant 0 : index
    %c7 = arith.constant 7 : index
    %67 = vector.load %arg2[%c0_40, %c7] : memref<32x9xf32, #tpu.memory_space<vmem>>, vector<32x1xf32>
    %68 = vector.broadcast %67 : vector<32x1xf32> to vector<32x64xf32>
    %69 = arith.mulf %66, %68 : vector<32x64xf32>
    %70 = arith.truncf %69 : vector<32x64xf32> to vector<32x64xbf16>
    %c7_41 = arith.constant 7 : index
    %c0_42 = arith.constant 0 : index
    %c0_43 = arith.constant 0 : index
    %71 = vector.load %arg5[%c7_41, %c0_42, %c0_43] : memref<9x64x64xbf16, #tpu.memory_space<vmem>>, vector<1x64x64xbf16>
    %72 = vector.shape_cast %71 : vector<1x64x64xbf16> to vector<64x64xbf16>
    %cst_44 = arith.constant dense<0.000000e+00> : vector<32x64xf32>
    %73 = tpu.matmul %70, %72, %cst_44 {dimension_numbers = #tpu.dot_dimension_numbers<[1], [0], [0], [1], [0, 0, 1, 1], [], []>} : vector<32x64xbf16>, vector<64x64xbf16>, vector<32x64xf32> -> vector<32x64xf32>
    %74 = arith.addf %65, %73 : vector<32x64xf32>
    %c22_i32 = arith.constant 22 : i32
    %75 = tpu.dynamic_rotate %5 by %c22_i32 dim 0 : vector<32x64xf32>, i32 -> vector<32x64xf32>
    %c0_45 = arith.constant 0 : index
    %c8 = arith.constant 8 : index
    %76 = vector.load %arg2[%c0_45, %c8] : memref<32x9xf32, #tpu.memory_space<vmem>>, vector<32x1xf32>
    %77 = vector.broadcast %76 : vector<32x1xf32> to vector<32x64xf32>
    %78 = arith.mulf %75, %77 : vector<32x64xf32>
    %79 = arith.truncf %78 : vector<32x64xf32> to vector<32x64xbf16>
    %c8_46 = arith.constant 8 : index
    %c0_47 = arith.constant 0 : index
    %c0_48 = arith.constant 0 : index
    %80 = vector.load %arg5[%c8_46, %c0_47, %c0_48] : memref<9x64x64xbf16, #tpu.memory_space<vmem>>, vector<1x64x64xbf16>
    %81 = vector.shape_cast %80 : vector<1x64x64xbf16> to vector<64x64xbf16>
    %cst_49 = arith.constant dense<0.000000e+00> : vector<32x64xf32>
    %82 = tpu.matmul %79, %81, %cst_49 {dimension_numbers = #tpu.dot_dimension_numbers<[1], [0], [0], [1], [0, 0, 1, 1], [], []>} : vector<32x64xbf16>, vector<64x64xbf16>, vector<32x64xf32> -> vector<32x64xf32>
    %83 = arith.addf %74, %82 : vector<32x64xf32>
    %c0_50 = arith.constant 0 : index
    %c0_51 = arith.constant 0 : index
    %84 = vector.load %arg6[%c0_50, %c0_51] : memref<1x64xf32, #tpu.memory_space<vmem>>, vector<1x64xf32>
    %85 = vector.broadcast %84 : vector<1x64xf32> to vector<32x64xf32>
    %86 = arith.addf %83, %85 : vector<32x64xf32>
    %cst_52 = arith.constant 0.000000e+00 : f32
    %87 = vector.broadcast %cst_52 : f32 to vector<32x64xf32>
    %88 = arith.maximumf %86, %87 : vector<32x64xf32>
    %cst_53 = arith.constant 0.000000e+00 : f32
    %89 = vector.broadcast %cst_53 : f32 to vector<2x64xf32>
    %90 = vector.extract_strided_slice %88 {offsets = [0, 0], sizes = [2, 64], strides = [1, 1]} : vector<32x64xf32> to vector<2x64xf32>
    %91 = arith.truncf %90 : vector<2x64xf32> to vector<2x64xbf16>
    %c0_54 = arith.constant 0 : index
    %c0_55 = arith.constant 0 : index
    %c0_56 = arith.constant 0 : index
    %92 = vector.load %arg7[%c0_54, %c0_55, %c0_56] : memref<16x64x64xbf16, #tpu.memory_space<vmem>>, vector<1x64x64xbf16>
    %93 = vector.shape_cast %92 : vector<1x64x64xbf16> to vector<64x64xbf16>
    %cst_57 = arith.constant dense<0.000000e+00> : vector<2x64xf32>
    %94 = tpu.matmul %91, %93, %cst_57 {dimension_numbers = #tpu.dot_dimension_numbers<[1], [0], [0], [1], [0, 0, 1, 1], [], []>} : vector<2x64xbf16>, vector<64x64xbf16>, vector<2x64xf32> -> vector<2x64xf32>
    %95 = arith.addf %89, %94 : vector<2x64xf32>
    %96 = vector.extract_strided_slice %88 {offsets = [2, 0], sizes = [2, 64], strides = [1, 1]} : vector<32x64xf32> to vector<2x64xf32>
    %97 = arith.truncf %96 : vector<2x64xf32> to vector<2x64xbf16>
    %c1_58 = arith.constant 1 : index
    %c0_59 = arith.constant 0 : index
    %c0_60 = arith.constant 0 : index
    %98 = vector.load %arg7[%c1_58, %c0_59, %c0_60] : memref<16x64x64xbf16, #tpu.memory_space<vmem>>, vector<1x64x64xbf16>
    %99 = vector.shape_cast %98 : vector<1x64x64xbf16> to vector<64x64xbf16>
    %cst_61 = arith.constant dense<0.000000e+00> : vector<2x64xf32>
    %100 = tpu.matmul %97, %99, %cst_61 {dimension_numbers = #tpu.dot_dimension_numbers<[1], [0], [0], [1], [0, 0, 1, 1], [], []>} : vector<2x64xbf16>, vector<64x64xbf16>, vector<2x64xf32> -> vector<2x64xf32>
    %101 = arith.addf %95, %100 : vector<2x64xf32>
    %102 = vector.extract_strided_slice %88 {offsets = [4, 0], sizes = [2, 64], strides = [1, 1]} : vector<32x64xf32> to vector<2x64xf32>
    %103 = arith.truncf %102 : vector<2x64xf32> to vector<2x64xbf16>
    %c2_62 = arith.constant 2 : index
    %c0_63 = arith.constant 0 : index
    %c0_64 = arith.constant 0 : index
    %104 = vector.load %arg7[%c2_62, %c0_63, %c0_64] : memref<16x64x64xbf16, #tpu.memory_space<vmem>>, vector<1x64x64xbf16>
    %105 = vector.shape_cast %104 : vector<1x64x64xbf16> to vector<64x64xbf16>
    %cst_65 = arith.constant dense<0.000000e+00> : vector<2x64xf32>
    %106 = tpu.matmul %103, %105, %cst_65 {dimension_numbers = #tpu.dot_dimension_numbers<[1], [0], [0], [1], [0, 0, 1, 1], [], []>} : vector<2x64xbf16>, vector<64x64xbf16>, vector<2x64xf32> -> vector<2x64xf32>
    %107 = arith.addf %101, %106 : vector<2x64xf32>
    %108 = vector.extract_strided_slice %88 {offsets = [6, 0], sizes = [2, 64], strides = [1, 1]} : vector<32x64xf32> to vector<2x64xf32>
    %109 = arith.truncf %108 : vector<2x64xf32> to vector<2x64xbf16>
    %c3_66 = arith.constant 3 : index
    %c0_67 = arith.constant 0 : index
    %c0_68 = arith.constant 0 : index
    %110 = vector.load %arg7[%c3_66, %c0_67, %c0_68] : memref<16x64x64xbf16, #tpu.memory_space<vmem>>, vector<1x64x64xbf16>
    %111 = vector.shape_cast %110 : vector<1x64x64xbf16> to vector<64x64xbf16>
    %cst_69 = arith.constant dense<0.000000e+00> : vector<2x64xf32>
    %112 = tpu.matmul %109, %111, %cst_69 {dimension_numbers = #tpu.dot_dimension_numbers<[1], [0], [0], [1], [0, 0, 1, 1], [], []>} : vector<2x64xbf16>, vector<64x64xbf16>, vector<2x64xf32> -> vector<2x64xf32>
    %113 = arith.addf %107, %112 : vector<2x64xf32>
    %114 = vector.extract_strided_slice %88 {offsets = [8, 0], sizes = [2, 64], strides = [1, 1]} : vector<32x64xf32> to vector<2x64xf32>
    %115 = arith.truncf %114 : vector<2x64xf32> to vector<2x64xbf16>
    %c4_70 = arith.constant 4 : index
    %c0_71 = arith.constant 0 : index
    %c0_72 = arith.constant 0 : index
    %116 = vector.load %arg7[%c4_70, %c0_71, %c0_72] : memref<16x64x64xbf16, #tpu.memory_space<vmem>>, vector<1x64x64xbf16>
    %117 = vector.shape_cast %116 : vector<1x64x64xbf16> to vector<64x64xbf16>
    %cst_73 = arith.constant dense<0.000000e+00> : vector<2x64xf32>
    %118 = tpu.matmul %115, %117, %cst_73 {dimension_numbers = #tpu.dot_dimension_numbers<[1], [0], [0], [1], [0, 0, 1, 1], [], []>} : vector<2x64xbf16>, vector<64x64xbf16>, vector<2x64xf32> -> vector<2x64xf32>
    %119 = arith.addf %113, %118 : vector<2x64xf32>
    %120 = vector.extract_strided_slice %88 {offsets = [10, 0], sizes = [2, 64], strides = [1, 1]} : vector<32x64xf32> to vector<2x64xf32>
    %121 = arith.truncf %120 : vector<2x64xf32> to vector<2x64xbf16>
    %c5_74 = arith.constant 5 : index
    %c0_75 = arith.constant 0 : index
    %c0_76 = arith.constant 0 : index
    %122 = vector.load %arg7[%c5_74, %c0_75, %c0_76] : memref<16x64x64xbf16, #tpu.memory_space<vmem>>, vector<1x64x64xbf16>
    %123 = vector.shape_cast %122 : vector<1x64x64xbf16> to vector<64x64xbf16>
    %cst_77 = arith.constant dense<0.000000e+00> : vector<2x64xf32>
    %124 = tpu.matmul %121, %123, %cst_77 {dimension_numbers = #tpu.dot_dimension_numbers<[1], [0], [0], [1], [0, 0, 1, 1], [], []>} : vector<2x64xbf16>, vector<64x64xbf16>, vector<2x64xf32> -> vector<2x64xf32>
    %125 = arith.addf %119, %124 : vector<2x64xf32>
    %126 = vector.extract_strided_slice %88 {offsets = [12, 0], sizes = [2, 64], strides = [1, 1]} : vector<32x64xf32> to vector<2x64xf32>
    %127 = arith.truncf %126 : vector<2x64xf32> to vector<2x64xbf16>
    %c6_78 = arith.constant 6 : index
    %c0_79 = arith.constant 0 : index
    %c0_80 = arith.constant 0 : index
    %128 = vector.load %arg7[%c6_78, %c0_79, %c0_80] : memref<16x64x64xbf16, #tpu.memory_space<vmem>>, vector<1x64x64xbf16>
    %129 = vector.shape_cast %128 : vector<1x64x64xbf16> to vector<64x64xbf16>
    %cst_81 = arith.constant dense<0.000000e+00> : vector<2x64xf32>
    %130 = tpu.matmul %127, %129, %cst_81 {dimension_numbers = #tpu.dot_dimension_numbers<[1], [0], [0], [1], [0, 0, 1, 1], [], []>} : vector<2x64xbf16>, vector<64x64xbf16>, vector<2x64xf32> -> vector<2x64xf32>
    %131 = arith.addf %125, %130 : vector<2x64xf32>
    %132 = vector.extract_strided_slice %88 {offsets = [14, 0], sizes = [2, 64], strides = [1, 1]} : vector<32x64xf32> to vector<2x64xf32>
    %133 = arith.truncf %132 : vector<2x64xf32> to vector<2x64xbf16>
    %c7_82 = arith.constant 7 : index
    %c0_83 = arith.constant 0 : index
    %c0_84 = arith.constant 0 : index
    %134 = vector.load %arg7[%c7_82, %c0_83, %c0_84] : memref<16x64x64xbf16, #tpu.memory_space<vmem>>, vector<1x64x64xbf16>
    %135 = vector.shape_cast %134 : vector<1x64x64xbf16> to vector<64x64xbf16>
    %cst_85 = arith.constant dense<0.000000e+00> : vector<2x64xf32>
    %136 = tpu.matmul %133, %135, %cst_85 {dimension_numbers = #tpu.dot_dimension_numbers<[1], [0], [0], [1], [0, 0, 1, 1], [], []>} : vector<2x64xbf16>, vector<64x64xbf16>, vector<2x64xf32> -> vector<2x64xf32>
    %137 = arith.addf %131, %136 : vector<2x64xf32>
    %138 = vector.extract_strided_slice %88 {offsets = [16, 0], sizes = [2, 64], strides = [1, 1]} : vector<32x64xf32> to vector<2x64xf32>
    %139 = arith.truncf %138 : vector<2x64xf32> to vector<2x64xbf16>
    %c8_86 = arith.constant 8 : index
    %c0_87 = arith.constant 0 : index
    %c0_88 = arith.constant 0 : index
    %140 = vector.load %arg7[%c8_86, %c0_87, %c0_88] : memref<16x64x64xbf16, #tpu.memory_space<vmem>>, vector<1x64x64xbf16>
    %141 = vector.shape_cast %140 : vector<1x64x64xbf16> to vector<64x64xbf16>
    %cst_89 = arith.constant dense<0.000000e+00> : vector<2x64xf32>
    %142 = tpu.matmul %139, %141, %cst_89 {dimension_numbers = #tpu.dot_dimension_numbers<[1], [0], [0], [1], [0, 0, 1, 1], [], []>} : vector<2x64xbf16>, vector<64x64xbf16>, vector<2x64xf32> -> vector<2x64xf32>
    %143 = arith.addf %137, %142 : vector<2x64xf32>
    %144 = vector.extract_strided_slice %88 {offsets = [18, 0], sizes = [2, 64], strides = [1, 1]} : vector<32x64xf32> to vector<2x64xf32>
    %145 = arith.truncf %144 : vector<2x64xf32> to vector<2x64xbf16>
    %c9 = arith.constant 9 : index
    %c0_90 = arith.constant 0 : index
    %c0_91 = arith.constant 0 : index
    %146 = vector.load %arg7[%c9, %c0_90, %c0_91] : memref<16x64x64xbf16, #tpu.memory_space<vmem>>, vector<1x64x64xbf16>
    %147 = vector.shape_cast %146 : vector<1x64x64xbf16> to vector<64x64xbf16>
    %cst_92 = arith.constant dense<0.000000e+00> : vector<2x64xf32>
    %148 = tpu.matmul %145, %147, %cst_92 {dimension_numbers = #tpu.dot_dimension_numbers<[1], [0], [0], [1], [0, 0, 1, 1], [], []>} : vector<2x64xbf16>, vector<64x64xbf16>, vector<2x64xf32> -> vector<2x64xf32>
    %149 = arith.addf %143, %148 : vector<2x64xf32>
    %150 = vector.extract_strided_slice %88 {offsets = [20, 0], sizes = [2, 64], strides = [1, 1]} : vector<32x64xf32> to vector<2x64xf32>
    %151 = arith.truncf %150 : vector<2x64xf32> to vector<2x64xbf16>
    %c10 = arith.constant 10 : index
    %c0_93 = arith.constant 0 : index
    %c0_94 = arith.constant 0 : index
    %152 = vector.load %arg7[%c10, %c0_93, %c0_94] : memref<16x64x64xbf16, #tpu.memory_space<vmem>>, vector<1x64x64xbf16>
    %153 = vector.shape_cast %152 : vector<1x64x64xbf16> to vector<64x64xbf16>
    %cst_95 = arith.constant dense<0.000000e+00> : vector<2x64xf32>
    %154 = tpu.matmul %151, %153, %cst_95 {dimension_numbers = #tpu.dot_dimension_numbers<[1], [0], [0], [1], [0, 0, 1, 1], [], []>} : vector<2x64xbf16>, vector<64x64xbf16>, vector<2x64xf32> -> vector<2x64xf32>
    %155 = arith.addf %149, %154 : vector<2x64xf32>
    %156 = vector.extract_strided_slice %88 {offsets = [22, 0], sizes = [2, 64], strides = [1, 1]} : vector<32x64xf32> to vector<2x64xf32>
    %157 = arith.truncf %156 : vector<2x64xf32> to vector<2x64xbf16>
    %c11 = arith.constant 11 : index
    %c0_96 = arith.constant 0 : index
    %c0_97 = arith.constant 0 : index
    %158 = vector.load %arg7[%c11, %c0_96, %c0_97] : memref<16x64x64xbf16, #tpu.memory_space<vmem>>, vector<1x64x64xbf16>
    %159 = vector.shape_cast %158 : vector<1x64x64xbf16> to vector<64x64xbf16>
    %cst_98 = arith.constant dense<0.000000e+00> : vector<2x64xf32>
    %160 = tpu.matmul %157, %159, %cst_98 {dimension_numbers = #tpu.dot_dimension_numbers<[1], [0], [0], [1], [0, 0, 1, 1], [], []>} : vector<2x64xbf16>, vector<64x64xbf16>, vector<2x64xf32> -> vector<2x64xf32>
    %161 = arith.addf %155, %160 : vector<2x64xf32>
    %162 = vector.extract_strided_slice %88 {offsets = [24, 0], sizes = [2, 64], strides = [1, 1]} : vector<32x64xf32> to vector<2x64xf32>
    %163 = arith.truncf %162 : vector<2x64xf32> to vector<2x64xbf16>
    %c12 = arith.constant 12 : index
    %c0_99 = arith.constant 0 : index
    %c0_100 = arith.constant 0 : index
    %164 = vector.load %arg7[%c12, %c0_99, %c0_100] : memref<16x64x64xbf16, #tpu.memory_space<vmem>>, vector<1x64x64xbf16>
    %165 = vector.shape_cast %164 : vector<1x64x64xbf16> to vector<64x64xbf16>
    %cst_101 = arith.constant dense<0.000000e+00> : vector<2x64xf32>
    %166 = tpu.matmul %163, %165, %cst_101 {dimension_numbers = #tpu.dot_dimension_numbers<[1], [0], [0], [1], [0, 0, 1, 1], [], []>} : vector<2x64xbf16>, vector<64x64xbf16>, vector<2x64xf32> -> vector<2x64xf32>
    %167 = arith.addf %161, %166 : vector<2x64xf32>
    %168 = vector.extract_strided_slice %88 {offsets = [26, 0], sizes = [2, 64], strides = [1, 1]} : vector<32x64xf32> to vector<2x64xf32>
    %169 = arith.truncf %168 : vector<2x64xf32> to vector<2x64xbf16>
    %c13 = arith.constant 13 : index
    %c0_102 = arith.constant 0 : index
    %c0_103 = arith.constant 0 : index
    %170 = vector.load %arg7[%c13, %c0_102, %c0_103] : memref<16x64x64xbf16, #tpu.memory_space<vmem>>, vector<1x64x64xbf16>
    %171 = vector.shape_cast %170 : vector<1x64x64xbf16> to vector<64x64xbf16>
    %cst_104 = arith.constant dense<0.000000e+00> : vector<2x64xf32>
    %172 = tpu.matmul %169, %171, %cst_104 {dimension_numbers = #tpu.dot_dimension_numbers<[1], [0], [0], [1], [0, 0, 1, 1], [], []>} : vector<2x64xbf16>, vector<64x64xbf16>, vector<2x64xf32> -> vector<2x64xf32>
    %173 = arith.addf %167, %172 : vector<2x64xf32>
    %174 = vector.extract_strided_slice %88 {offsets = [28, 0], sizes = [2, 64], strides = [1, 1]} : vector<32x64xf32> to vector<2x64xf32>
    %175 = arith.truncf %174 : vector<2x64xf32> to vector<2x64xbf16>
    %c14 = arith.constant 14 : index
    %c0_105 = arith.constant 0 : index
    %c0_106 = arith.constant 0 : index
    %176 = vector.load %arg7[%c14, %c0_105, %c0_106] : memref<16x64x64xbf16, #tpu.memory_space<vmem>>, vector<1x64x64xbf16>
    %177 = vector.shape_cast %176 : vector<1x64x64xbf16> to vector<64x64xbf16>
    %cst_107 = arith.constant dense<0.000000e+00> : vector<2x64xf32>
    %178 = tpu.matmul %175, %177, %cst_107 {dimension_numbers = #tpu.dot_dimension_numbers<[1], [0], [0], [1], [0, 0, 1, 1], [], []>} : vector<2x64xbf16>, vector<64x64xbf16>, vector<2x64xf32> -> vector<2x64xf32>
    %179 = arith.addf %173, %178 : vector<2x64xf32>
    %180 = vector.extract_strided_slice %88 {offsets = [30, 0], sizes = [2, 64], strides = [1, 1]} : vector<32x64xf32> to vector<2x64xf32>
    %181 = arith.truncf %180 : vector<2x64xf32> to vector<2x64xbf16>
    %c15 = arith.constant 15 : index
    %c0_108 = arith.constant 0 : index
    %c0_109 = arith.constant 0 : index
    %182 = vector.load %arg7[%c15, %c0_108, %c0_109] : memref<16x64x64xbf16, #tpu.memory_space<vmem>>, vector<1x64x64xbf16>
    %183 = vector.shape_cast %182 : vector<1x64x64xbf16> to vector<64x64xbf16>
    %cst_110 = arith.constant dense<0.000000e+00> : vector<2x64xf32>
    %184 = tpu.matmul %181, %183, %cst_110 {dimension_numbers = #tpu.dot_dimension_numbers<[1], [0], [0], [1], [0, 0, 1, 1], [], []>} : vector<2x64xbf16>, vector<64x64xbf16>, vector<2x64xf32> -> vector<2x64xf32>
    %185 = arith.addf %179, %184 : vector<2x64xf32>
    %c0_111 = arith.constant 0 : index
    %c0_112 = arith.constant 0 : index
    %186 = vector.load %arg8[%c0_111, %c0_112] : memref<1x64xf32, #tpu.memory_space<vmem>>, vector<1x64xf32>
    %187 = vector.broadcast %186 : vector<1x64xf32> to vector<2x64xf32>
    %188 = arith.addf %185, %187 : vector<2x64xf32>
    %cst_113 = arith.constant 0.000000e+00 : f32
    %189 = vector.broadcast %cst_113 : f32 to vector<2x64xf32>
    %190 = arith.maximumf %188, %189 : vector<2x64xf32>
    %c0_114 = arith.constant 0 : index
    %c0_115 = arith.constant 0 : index
    %191 = vector.load %arg9[%c0_114, %c0_115] : memref<64x4xf32, #tpu.memory_space<vmem>>, vector<64x4xf32>
    %cst_116 = arith.constant dense<0.000000e+00> : vector<2x4xf32>
    %192 = tpu.matmul %190, %191, %cst_116 {dimension_numbers = #tpu.dot_dimension_numbers<[1], [0], [0], [1], [0, 0, 1, 1], [], []>} : vector<2x64xf32>, vector<64x4xf32>, vector<2x4xf32> -> vector<2x4xf32>
    %c0_117 = arith.constant 0 : index
    %c0_118 = arith.constant 0 : index
    %193 = vector.load %arg10[%c0_117, %c0_118] : memref<1x4xf32, #tpu.memory_space<vmem>>, vector<1x4xf32>
    %194 = vector.broadcast %193 : vector<1x4xf32> to vector<2x4xf32>
    %195 = arith.addf %192, %194 : vector<2x4xf32>
    %cst_119 = arith.constant dense<0xFF800000> : vector<2xf32>
    %196 = vector.multi_reduction <maximumf>, %195, %cst_119 [1] : vector<2x4xf32> to vector<2xf32>
    %197 = vector.shape_cast %196 : vector<2xf32> to vector<2x1xf32>
    %198 = vector.broadcast %197 : vector<2x1xf32> to vector<2x4xf32>
    %199 = arith.subf %195, %198 : vector<2x4xf32>
    %200 = math.exp %199 : vector<2x4xf32>
    %cst_120 = arith.constant dense<0.000000e+00> : vector<2xf32>
    %201 = vector.multi_reduction <add>, %200, %cst_120 [1] : vector<2x4xf32> to vector<2xf32>
    %202 = vector.shape_cast %201 : vector<2xf32> to vector<2x1xf32>
    %203 = tpu.reciprocal %202 {approx = true} : vector<2x1xf32> -> vector<2x1xf32>
    %204 = vector.broadcast %203 : vector<2x1xf32> to vector<2x4xf32>
    %205 = arith.mulf %200, %204 : vector<2x4xf32>
    %c0_121 = arith.constant 0 : index
    %c0_122 = arith.constant 0 : index
    %206 = vector.load %arg11[%c0_121, %c0_122] : memref<2x4xf32, #tpu.memory_space<vmem>>, vector<2x4xf32>
    tpu.vector_store %arg11[%c0_121, %c0_122], %205 {strides = array<i32>} : memref<2x4xf32, #tpu.memory_space<vmem>>, vector<2x4xf32>,
    return
  }
  func.func @transform_0(%arg0: i32) -> (i32, i32) {
    %c0_i32 = arith.constant 0 : i32
    %c0_i32_0 = arith.constant 0 : i32
    return %arg0, %c0_i32 : i32, i32
  }
  func.func @transform_1(%arg0: i32) -> (i32, i32) {
    %c0_i32 = arith.constant 0 : i32
    %c0_i32_0 = arith.constant 0 : i32
    %c0_i32_1 = arith.constant 0 : i32
    return %c0_i32, %c0_i32_0 : i32, i32
  }
  func.func @transform_2(%arg0: i32) -> (i32, i32) {
    %c0_i32 = arith.constant 0 : i32
    %c0_i32_0 = arith.constant 0 : i32
    %c0_i32_1 = arith.constant 0 : i32
    return %c0_i32, %c0_i32_0 : i32, i32
  }
  func.func @transform_3(%arg0: i32) -> (i32, i32) {
    %c0_i32 = arith.constant 0 : i32
    %c0_i32_0 = arith.constant 0 : i32
    %c0_i32_1 = arith.constant 0 : i32
    return %c0_i32, %c0_i32_0 : i32, i32
  }
  func.func @transform_4(%arg0: i32) -> (i32, i32, i32) {
    %c0_i32 = arith.constant 0 : i32
    %c0_i32_0 = arith.constant 0 : i32
    %c0_i32_1 = arith.constant 0 : i32
    %c0_i32_2 = arith.constant 0 : i32
    return %c0_i32, %c0_i32_0, %c0_i32_1 : i32, i32, i32
  }
  func.func @transform_5(%arg0: i32) -> (i32, i32) {
    %c0_i32 = arith.constant 0 : i32
    %c0_i32_0 = arith.constant 0 : i32
    %c0_i32_1 = arith.constant 0 : i32
    return %c0_i32, %c0_i32_0 : i32, i32
  }
  func.func @transform_6(%arg0: i32) -> (i32, i32, i32) {
    %c0_i32 = arith.constant 0 : i32
    %c0_i32_0 = arith.constant 0 : i32
    %c0_i32_1 = arith.constant 0 : i32
    %c0_i32_2 = arith.constant 0 : i32
    return %c0_i32, %c0_i32_0, %c0_i32_1 : i32, i32, i32
  }
  func.func @transform_7(%arg0: i32) -> (i32, i32) {
    %c0_i32 = arith.constant 0 : i32
    %c0_i32_0 = arith.constant 0 : i32
    %c0_i32_1 = arith.constant 0 : i32
    return %c0_i32, %c0_i32_0 : i32, i32
  }
  func.func @transform_8(%arg0: i32) -> (i32, i32) {
    %c0_i32 = arith.constant 0 : i32
    %c0_i32_0 = arith.constant 0 : i32
    %c0_i32_1 = arith.constant 0 : i32
    return %c0_i32, %c0_i32_0 : i32, i32
  }
  func.func @transform_9(%arg0: i32) -> (i32, i32) {
    %c0_i32 = arith.constant 0 : i32
    %c0_i32_0 = arith.constant 0 : i32
    %c0_i32_1 = arith.constant 0 : i32
    return %c0_i32, %c0_i32_0 : i32, i32
  }
  func.func @transform_10(%arg0: i32) -> (i32, i32) {
    %c0_i32 = arith.constant 0 : i32
    %c0_i32_0 = arith.constant 0 : i32
    return %arg0, %c0_i32 : i32, i32
  }
}

</mosaic_0001>

<llo_original>
// kernel: cnn_net_no_first_relu.1
$region0: #{cnn_net_no_first_relu.1}
  #allocation0 [shape = 'u32[]', space=smem, size = 0x4, offset = 0x4, fixed_abs, tag = 'smem constant byte address 0x4 - core index']
  #allocation1 [shape = 'u32[72,128]{1,0:T(1,128)}', space=vmem, size = 0x9000, scoped, tag = 'internal scratch']
  %s0 = inlined_call_operand.vmem [shape: f32[32,18], index: 0, kind: input, shape index: {}]
  %s1 = inlined_call_operand.vmem [shape: f32[32,9], index: 1, kind: input, shape index: {}]
  %s2 = inlined_call_operand.vmem [shape: f32[18,64], index: 2, kind: input, shape index: {}]
  %s3 = inlined_call_operand.vmem [shape: f32[1,64], index: 3, kind: input, shape index: {}]
  %s4 = inlined_call_operand.vmem [shape: bf16[9,64,64], index: 4, kind: input, shape index: {}]
  %s5 = inlined_call_operand.vmem [shape: f32[1,64], index: 5, kind: input, shape index: {}]
  %s6 = inlined_call_operand.vmem [shape: bf16[16,64,64], index: 6, kind: input, shape index: {}]
  %s7 = inlined_call_operand.vmem [shape: f32[1,64], index: 7, kind: input, shape index: {}]
  %s8 = inlined_call_operand.vmem [shape: f32[64,4], index: 8, kind: input, shape index: {}]
  %s9 = inlined_call_operand.vmem [shape: f32[1,4], index: 9, kind: input, shape index: {}]
  %s10 = inlined_call_operand.hbm [shape: f32[2,4], index: 10, kind: output, shape index: {}]
  %s11 = sld [smem:[#allocation0]]
  $region50: #{cnn_net_no_first_relu.1} parent=0
    _
  %s13 = ssub.s32 1, %s11
  %s14 = scalar_select 0, %s13, %s11
  $region1: #{cnn_net_no_first_relu.1} parent=0
    #allocation2 [shape = 'u8[1024]{0}', space=vmem, size = 0x400, scoped, tag = 'output window, operand 0, single buffered']
    #allocation3 [shape = 's32[1]{0}', space=sflag, size = 0x4, scoped, tag = 'scoped memory for cnn_net_no_first_relu.1']
    %15 = vsyncpa [#allocation3], 0
    // Predicated region
    $region2: #{cnn_net_no_first_relu.1} parent=1 // pred_check
      _
    $region3: #{cnn_net_no_first_relu.1} parent=1 // pred_check_branch
      %17 = sbr.rel (0) target = $region5
    $region4: #{cnn_net_no_first_relu.1} parent=1 // pred_region
      _
    $region5: #{cnn_net_no_first_relu.1} parent=1 // pred_fallthru
      _
    // Predicated region
    $region6: #{cnn_net_no_first_relu.1} parent=1 // pred_check
      _
    $region7: #{cnn_net_no_first_relu.1} parent=1 // pred_check_branch
      %19 = sbr.rel (0) target = $region9
    $region8: #{cnn_net_no_first_relu.1} parent=1 // pred_region
      _
    $region9: #{cnn_net_no_first_relu.1} parent=1 // pred_fallthru
      _
    // Predicated region
    $region10: #{cnn_net_no_first_relu.1} parent=1 // pred_check
      _
    $region11: #{cnn_net_no_first_relu.1} parent=1 // pred_check_branch
      %21 = sbr.rel (0) target = $region13
    $region12: #{cnn_net_no_first_relu.1} parent=1 // pred_region
      _
    $region13: #{cnn_net_no_first_relu.1} parent=1 // pred_fallthru
      _
    // Predicated region
    $region14: #{cnn_net_no_first_relu.1} parent=1 // pred_check
      _
    $region15: #{cnn_net_no_first_relu.1} parent=1 // pred_check_branch
      %23 = sbr.rel (0) target = $region17
    $region16: #{cnn_net_no_first_relu.1} parent=1 // pred_region
      _
    $region17: #{cnn_net_no_first_relu.1} parent=1 // pred_fallthru
      _
    // Predicated region
    $region18: #{cnn_net_no_first_relu.1} parent=1 // pred_check
      _
    $region19: #{cnn_net_no_first_relu.1} parent=1 // pred_check_branch
      %25 = sbr.rel (0) target = $region21
    $region20: #{cnn_net_no_first_relu.1} parent=1 // pred_region
      _
    $region21: #{cnn_net_no_first_relu.1} parent=1 // pred_fallthru
      _
    // Predicated region
    $region22: #{cnn_net_no_first_relu.1} parent=1 // pred_check
      _
    $region23: #{cnn_net_no_first_relu.1} parent=1 // pred_check_branch
      %27 = sbr.rel (0) target = $region25
    $region24: #{cnn_net_no_first_relu.1} parent=1 // pred_region
      _
    $region25: #{cnn_net_no_first_relu.1} parent=1 // pred_fallthru
      _
    // Predicated region
    $region26: #{cnn_net_no_first_relu.1} parent=1 // pred_check
      _
    $region27: #{cnn_net_no_first_relu.1} parent=1 // pred_check_branch
      %29 = sbr.rel (0) target = $region29
    $region28: #{cnn_net_no_first_relu.1} parent=1 // pred_region
      _
    $region29: #{cnn_net_no_first_relu.1} parent=1 // pred_fallthru
      _
    // Predicated region
    $region30: #{cnn_net_no_first_relu.1} parent=1 // pred_check
      _
    $region31: #{cnn_net_no_first_relu.1} parent=1 // pred_check_branch
      %31 = sbr.rel (0) target = $region33
    $region32: #{cnn_net_no_first_relu.1} parent=1 // pred_region
      _
    $region33: #{cnn_net_no_first_relu.1} parent=1 // pred_fallthru
      _
    // Predicated region
    $region34: #{cnn_net_no_first_relu.1} parent=1 // pred_check
      _
    $region35: #{cnn_net_no_first_relu.1} parent=1 // pred_check_branch
      %33 = sbr.rel (0) target = $region37
    $region36: #{cnn_net_no_first_relu.1} parent=1 // pred_region
      _
    $region37: #{cnn_net_no_first_relu.1} parent=1 // pred_fallthru
      _
    // Predicated region
    $region38: #{cnn_net_no_first_relu.1} parent=1 // pred_check
      _
    $region39: #{cnn_net_no_first_relu.1} parent=1 // pred_check_branch
      %35 = sbr.rel (0) target = $region41
    $region40: #{cnn_net_no_first_relu.1} parent=1 // pred_region
      _
    $region41: #{cnn_net_no_first_relu.1} parent=1 // pred_fallthru
      _
    %v37 = vld [vmem:[%s0] sm:$0xff]
    %v38 = vld [vmem:[%s0 + $0x8] sm:$0xff]
    %v39 = vld [vmem:[%s0 + $0x10] sm:$0xff]
    %v40 = vld [vmem:[%s0 + $0x18] sm:$0xff]
    %v41 = vld [vmem:[%s2] sm:$0xff]
    %v42 = vld [vmem:[%s2 + $0x8] sm:$0xff]
    %v43 = vld [vmem:[%s2 + $0x10] sm:$0x3]
    %v44 = vld [vmem:[%s3] sm:$0x1]
    %v46 = vperm.slane %v44, 0
    %vm48 = vcmask 146432
    %v50 = vsel %vm48, %v37, 0
    %v53 = vsel %vm48, %v38, 0
    %v56 = vsel %vm48, %v39, 0
    %v59 = vsel %vm48, %v40, 0
    %vm61 = vcmask 1041408
    %v63 = vsel %vm61, %v43, 0
    %65 = vmatpush.msra.mxu0 0.0
    %66 = vmatpush.msra.mxu0 0.0
    %67 = vmatpush.msra.mxu0 0.0
    %68 = vmatpush.msra.mxu0 0.0
    %69 = vmatpush.msra.mxu0 0.0
    %70 = vmatpush.msra.mxu0 0.0
    %71 = vmatpush.msra.mxu0 0.0
    %72 = vmatpush.msra.mxu0 0.0
    %73 = vmatpush.msra.mxu0 0.0
    %74 = vmatpush.msra.mxu0 0.0
    %75 = vmatpush.msra.mxu0 0.0
    %76 = vmatpush.msra.mxu0 0.0
    %77 = vmatpush.msra.mxu0 0.0
    %78 = vmatpush.msra.mxu0 %v63
    %79 = vmatpush.msra.mxu0 %v42
    %80 = vmatpush.msra.mxu0 %v41
    %81 = vmatmul.f32.gmra.mxu0 %v50
    %v82 = vpop.f32.mrf.mxu0
    %v83 = vadd.f32 %v46, %v82
    %84 = vmatmul.f32.gmra.mxu0 %v53
    %v85 = vpop.f32.mrf.mxu0
    %v86 = vadd.f32 %v46, %v85
    %87 = vmatmul.f32.gmra.mxu0 %v56
    %v88 = vpop.f32.mrf.mxu0
    %v89 = vadd.f32 %v46, %v88
    %90 = vmatmul.f32.gmra.mxu0 %v59
    %v91 = vpop.f32.mrf.mxu0
    %v92 = vadd.f32 %v46, %v91
    %93 = vdwg.mxu0
    %v94 = vrot.slane %v83, 6
    %v95 = vrot.slane %v86, 6
    %v96 = vrot.slane %v89, 6
    %v97 = vrot.slane %v92, 6
    %v98 = vlaneseq
    %v99 = vshrl.u32 %v98, 7
    %vm100 = vcmp.lt.s32.totalorder %v99, 2
    %v101 = vsel %vm100, %v96, %v97
    %v102 = vsel %vm100, %v95, %v96
    %v103 = vsel %vm100, %v94, %v95
    %v104 = vsel %vm100, %v97, %v94
    %v105 = vld [vmem:[%s1] sm:$0xff]
    %v106 = vld [vmem:[%s1 + $0x8] sm:$0xff]
    %v107 = vld [vmem:[%s1 + $0x10] sm:$0xff]
    %v108 = vld [vmem:[%s1 + $0x18] sm:$0xff]
    %110 = vset.pattern.permute.xlu0 0
    %111 = vperm.xlu0 %110, %v105
    %v112 = vpop.permute.xlu0 %111
    %115 = vset.pattern.permute.xlu0 0
    %116 = vperm.xlu0 %115, %v106
    %v117 = vpop.permute.xlu0 %116
    %120 = vset.pattern.permute.xlu0 0
    %121 = vperm.xlu0 %120, %v107
    %v122 = vpop.permute.xlu0 %121
    %125 = vset.pattern.permute.xlu0 0
    %126 = vperm.xlu0 %125, %v108
    %v127 = vpop.permute.xlu0 %126
    %v129 = vmul.f32 %v101, %v112
    %v130 = vmul.f32 %v104, %v117
    %v131 = vmul.f32 %v103, %v122
    %v132 = vmul.f32 %v102, %v127
    %v133 = vpack.c.bf16 %v130, %v129
    %v134 = vpack.c.bf16 %v132, %v131
    %v135 = vld [vmem:[%s4] sm:$0xf]
    %v136 = vld [vmem:[%s4 + $0x4] sm:$0xf]
    %v137 = vld [vmem:[%s4 + $0x8] sm:$0xf]
    %v138 = vld [vmem:[%s4 + $0xc] sm:$0xf]
    %v139 = vld [vmem:[%s4 + $0x10] sm:$0xf]
    %v140 = vld [vmem:[%s4 + $0x14] sm:$0xf]
    %v141 = vld [vmem:[%s4 + $0x18] sm:$0xf]
    %v142 = vld [vmem:[%s4 + $0x1c] sm:$0xf]
    %143 = vset.pattern.permute.xlu0 1
    %144 = vperm.xlu0 %143, %v105
    %v145 = vpop.permute.xlu0 %144
    %147 = vset.pattern.permute.xlu0 1
    %148 = vperm.xlu0 %147, %v106
    %v149 = vpop.permute.xlu0 %148
    %151 = vset.pattern.permute.xlu0 1
    %152 = vperm.xlu0 %151, %v107
    %v153 = vpop.permute.xlu0 %152
    %155 = vset.pattern.permute.xlu0 1
    %156 = vperm.xlu0 %155, %v108
    %v157 = vpop.permute.xlu0 %156
    %v159 = vmul.f32 %v92, %v145
    %v160 = vmul.f32 %v83, %v149
    %v161 = vmul.f32 %v86, %v153
    %v162 = vmul.f32 %v89, %v157
    %v163 = vpack.c.bf16 %v160, %v159
    %v164 = vpack.c.bf16 %v162, %v161
    %s165 = scalar_lea.vmem %s4, 32
    %v166 = vld [vmem:[%s165] sm:$0xf]
    %v167 = vld [vmem:[%s165 + $0x4] sm:$0xf]
    %v168 = vld [vmem:[%s165 + $0x8] sm:$0xf]
    %v169 = vld [vmem:[%s165 + $0xc] sm:$0xf]
    %v170 = vld [vmem:[%s165 + $0x10] sm:$0xf]
    %v171 = vld [vmem:[%s165 + $0x14] sm:$0xf]
    %v172 = vld [vmem:[%s165 + $0x18] sm:$0xf]
    %v173 = vld [vmem:[%s165 + $0x1c] sm:$0xf]
    %v182 = vunpack.c.l.b16 %v166
    %v183 = vunpack.c.l.b16 %v167
    %v184 = vunpack.c.l.b16 %v168
    %v185 = vunpack.c.l.b16 %v169
    %v186 = vunpack.c.l.b16 %v170
    %v187 = vunpack.c.l.b16 %v171
    %v188 = vunpack.c.l.b16 %v172
    %v189 = vunpack.c.l.b16 %v173
    %v190 = vpack.c.b16 %v183, %v182
    %v191 = vpack.c.b16 %v185, %v184
    %v192 = vpack.c.b16 %v187, %v186
    %v193 = vpack.c.b16 %v189, %v188
    %vm198 = vcmask 523264
    %v200 = vsel %vm198, %v163, 0
    %v203 = vsel %vm198, %v164, 0
    %205 = vmatpush.bf16.msra.mxu0 0
    %206 = vmatpush.bf16.msra.mxu0 0
    %207 = vmatpush.bf16.msra.mxu0 0
    %208 = vmatpush.bf16.msra.mxu0 0
    %209 = vmatpush.bf16.msra.mxu0 %v193
    %210 = vmatpush.bf16.msra.mxu0 %v192
    %211 = vmatpush.bf16.msra.mxu0 %v191
    %212 = vmatpush.bf16.msra.mxu0 %v190
    %213 = vmatmul.bf16.gmra.mxu0 %v200
    %v214 = vpop.f32.mrf.mxu0
    %v215 = vadd.f32 0.0, %v214
    %v216 = vpop.f32.mrf.mxu0
    %v217 = vadd.f32 0.0, %v216
    %218 = vmatmul.bf16.gmra.mxu0 %v203
    %v219 = vpop.f32.mrf.mxu0
    %v220 = vadd.f32 0.0, %v219
    %v221 = vpop.f32.mrf.mxu0
    %v222 = vadd.f32 0.0, %v221
    %223 = vdwg.mxu0
    %v232 = vunpack.c.l.b16 %v135
    %v233 = vunpack.c.l.b16 %v136
    %v234 = vunpack.c.l.b16 %v137
    %v235 = vunpack.c.l.b16 %v138
    %v236 = vunpack.c.l.b16 %v139
    %v237 = vunpack.c.l.b16 %v140
    %v238 = vunpack.c.l.b16 %v141
    %v239 = vunpack.c.l.b16 %v142
    %v240 = vpack.c.b16 %v233, %v232
    %v241 = vpack.c.b16 %v235, %v234
    %v242 = vpack.c.b16 %v237, %v236
    %v243 = vpack.c.b16 %v239, %v238
    %v249 = vsel %vm198, %v133, 0
    %v252 = vsel %vm198, %v134, 0
    %254 = vmatpush.bf16.msra.mxu0 0
    %255 = vmatpush.bf16.msra.mxu0 0
    %256 = vmatpush.bf16.msra.mxu0 0
    %257 = vmatpush.bf16.msra.mxu0 0
    %258 = vmatpush.bf16.msra.mxu0 %v243
    %259 = vmatpush.bf16.msra.mxu0 %v242
    %260 = vmatpush.bf16.msra.mxu0 %v241
    %261 = vmatpush.bf16.msra.mxu0 %v240
    %262 = vmatmul.bf16.gmra.mxu0 %v249
    %v263 = vpop.f32.mrf.mxu0
    %v264 = vadd.f32 %v215, %v263
    %v265 = vpop.f32.mrf.mxu0
    %v266 = vadd.f32 %v217, %v265
    %267 = vmatmul.bf16.gmra.mxu0 %v252
    %v268 = vpop.f32.mrf.mxu0
    %v269 = vadd.f32 %v220, %v268
    %v270 = vpop.f32.mrf.mxu0
    %v271 = vadd.f32 %v222, %v270
    %272 = vdwg.mxu0
    %v273 = vrot.slane %v83, 2
    %v274 = vrot.slane %v86, 2
    %v275 = vrot.slane %v89, 2
    %v276 = vrot.slane %v92, 2
    %vm277 = vcmp.lt.s32.totalorder %v99, 6
    %v278 = vsel %vm277, %v275, %v276
    %v279 = vsel %vm277, %v274, %v275
    %v280 = vsel %vm277, %v273, %v274
    %v281 = vsel %vm277, %v276, %v273
    %282 = vset.pattern.permute.xlu0 2
    %283 = vperm.xlu0 %282, %v105
    %v284 = vpop.permute.xlu0 %283
    %286 = vset.pattern.permute.xlu0 2
    %287 = vperm.xlu0 %286, %v106
    %v288 = vpop.permute.xlu0 %287
    %290 = vset.pattern.permute.xlu0 2
    %291 = vperm.xlu0 %290, %v107
    %v292 = vpop.permute.xlu0 %291
    %294 = vset.pattern.permute.xlu0 2
    %295 = vperm.xlu0 %294, %v108
    %v296 = vpop.permute.xlu0 %295
    %v298 = vmul.f32 %v281, %v284
    %v299 = vmul.f32 %v280, %v288
    %v300 = vmul.f32 %v279, %v292
    %v301 = vmul.f32 %v278, %v296
    %v302 = vpack.c.bf16 %v299, %v298
    %v303 = vpack.c.bf16 %v301, %v300
    %s304 = scalar_lea.vmem %s4, 64
    %v305 = vld [vmem:[%s304] sm:$0xf]
    %v306 = vld [vmem:[%s304 + $0x4] sm:$0xf]
    %v307 = vld [vmem:[%s304 + $0x8] sm:$0xf]
    %v308 = vld [vmem:[%s304 + $0xc] sm:$0xf]
    %v309 = vld [vmem:[%s304 + $0x10] sm:$0xf]
    %v310 = vld [vmem:[%s304 + $0x14] sm:$0xf]
    %v311 = vld [vmem:[%s304 + $0x18] sm:$0xf]
    %v312 = vld [vmem:[%s304 + $0x1c] sm:$0xf]
    %v321 = vunpack.c.l.b16 %v305
    %v322 = vunpack.c.l.b16 %v306
    %v323 = vunpack.c.l.b16 %v307
    %v324 = vunpack.c.l.b16 %v308
    %v325 = vunpack.c.l.b16 %v309
    %v326 = vunpack.c.l.b16 %v310
    %v327 = vunpack.c.l.b16 %v311
    %v328 = vunpack.c.l.b16 %v312
    %v329 = vpack.c.b16 %v322, %v321
    %v330 = vpack.c.b16 %v324, %v323
    %v331 = vpack.c.b16 %v326, %v325
    %v332 = vpack.c.b16 %v328, %v327
    %v338 = vsel %vm198, %v302, 0
    %v341 = vsel %vm198, %v303, 0
    %343 = vmatpush.bf16.msra.mxu0 0
    %344 = vmatpush.bf16.msra.mxu0 0
    %345 = vmatpush.bf16.msra.mxu0 0
    %346 = vmatpush.bf16.msra.mxu0 0
    %347 = vmatpush.bf16.msra.mxu0 %v332
    %348 = vmatpush.bf16.msra.mxu0 %v331
    %349 = vmatpush.bf16.msra.mxu0 %v330
    %350 = vmatpush.bf16.msra.mxu0 %v329
    %351 = vmatmul.bf16.gmra.mxu0 %v338
    %v352 = vpop.f32.mrf.mxu0
    %v353 = vadd.f32 0.0, %v352
    %v354 = vpop.f32.mrf.mxu0
    %v355 = vadd.f32 0.0, %v354
    %356 = vmatmul.bf16.gmra.mxu0 %v341
    %v357 = vpop.f32.mrf.mxu0
    %v358 = vadd.f32 0.0, %v357
    %v359 = vpop.f32.mrf.mxu0
    %v360 = vadd.f32 0.0, %v359
    %361 = vdwg.mxu0
    %v362 = vadd.f32 %v264, %v353
    %v363 = vadd.f32 %v266, %v355
    %v364 = vadd.f32 %v269, %v358
    %v365 = vadd.f32 %v271, %v360
    %366 = vset.pattern.permute.xlu0 3
    %367 = vperm.xlu0 %366, %v105
    %v368 = vpop.permute.xlu0 %367
    %370 = vset.pattern.permute.xlu0 3
    %371 = vperm.xlu0 %370, %v106
    %v372 = vpop.permute.xlu0 %371
    %374 = vset.pattern.permute.xlu0 3
    %375 = vperm.xlu0 %374, %v107
    %v376 = vpop.permute.xlu0 %375
    %378 = vset.pattern.permute.xlu0 3
    %379 = vperm.xlu0 %378, %v108
    %v380 = vpop.permute.xlu0 %379
    %v382 = vmul.f32 %v104, %v368
    %v383 = vmul.f32 %v103, %v372
    %v384 = vmul.f32 %v102, %v376
    %v385 = vmul.f32 %v101, %v380
    %v386 = vpack.c.bf16 %v383, %v382
    %v387 = vpack.c.bf16 %v385, %v384
    %s388 = scalar_lea.vmem %s4, 96
    %v389 = vld [vmem:[%s388] sm:$0xf]
    %v390 = vld [vmem:[%s388 + $0x4] sm:$0xf]
    %v391 = vld [vmem:[%s388 + $0x8] sm:$0xf]
    %v392 = vld [vmem:[%s388 + $0xc] sm:$0xf]
    %v393 = vld [vmem:[%s388 + $0x10] sm:$0xf]
    %v394 = vld [vmem:[%s388 + $0x14] sm:$0xf]
    %v395 = vld [vmem:[%s388 + $0x18] sm:$0xf]
    %v396 = vld [vmem:[%s388 + $0x1c] sm:$0xf]
    %v405 = vunpack.c.l.b16 %v389
    %v406 = vunpack.c.l.b16 %v390
    %v407 = vunpack.c.l.b16 %v391
    %v408 = vunpack.c.l.b16 %v392
    %v409 = vunpack.c.l.b16 %v393
    %v410 = vunpack.c.l.b16 %v394
    %v411 = vunpack.c.l.b16 %v395
    %v412 = vunpack.c.l.b16 %v396
    %v413 = vpack.c.b16 %v406, %v405
    %v414 = vpack.c.b16 %v408, %v407
    %v415 = vpack.c.b16 %v410, %v409
    %v416 = vpack.c.b16 %v412, %v411
    %v422 = vsel %vm198, %v386, 0
    %v425 = vsel %vm198, %v387, 0
    %427 = vmatpush.bf16.msra.mxu0 0
    %428 = vmatpush.bf16.msra.mxu0 0
    %429 = vmatpush.bf16.msra.mxu0 0
    %430 = vmatpush.bf16.msra.mxu0 0
    %431 = vmatpush.bf16.msra.mxu0 %v416
    %432 = vmatpush.bf16.msra.mxu0 %v415
    %433 = vmatpush.bf16.msra.mxu0 %v414
    %434 = vmatpush.bf16.msra.mxu0 %v413
    %435 = vmatmul.bf16.gmra.mxu0 %v422
    %v436 = vpop.f32.mrf.mxu0
    %v437 = vadd.f32 0.0, %v436
    %v438 = vpop.f32.mrf.mxu0
    %v439 = vadd.f32 0.0, %v438
    %440 = vmatmul.bf16.gmra.mxu0 %v425
    %v441 = vpop.f32.mrf.mxu0
    %v442 = vadd.f32 0.0, %v441
    %v443 = vpop.f32.mrf.mxu0
    %v444 = vadd.f32 0.0, %v443
    %445 = vdwg.mxu0
    %v446 = vadd.f32 %v362, %v437
    %v447 = vadd.f32 %v363, %v439
    %v448 = vadd.f32 %v364, %v442
    %v449 = vadd.f32 %v365, %v444
    %v450 = vpack.c.bf16 %v86, %v83
    %v451 = vpack.c.bf16 %v92, %v89
    %s452 = scalar_lea.vmem %s4, 128
    %v453 = vld [vmem:[%s452] sm:$0xf]
    %v454 = vld [vmem:[%s452 + $0x4] sm:$0xf]
    %v455 = vld [vmem:[%s452 + $0x8] sm:$0xf]
    %v456 = vld [vmem:[%s452 + $0xc] sm:$0xf]
    %v457 = vld [vmem:[%s452 + $0x10] sm:$0xf]
    %v458 = vld [vmem:[%s452 + $0x14] sm:$0xf]
    %v459 = vld [vmem:[%s452 + $0x18] sm:$0xf]
    %v460 = vld [vmem:[%s452 + $0x1c] sm:$0xf]
    %v469 = vunpack.c.l.b16 %v453
    %v470 = vunpack.c.l.b16 %v454
    %v471 = vunpack.c.l.b16 %v455
    %v472 = vunpack.c.l.b16 %v456
    %v473 = vunpack.c.l.b16 %v457
    %v474 = vunpack.c.l.b16 %v458
    %v475 = vunpack.c.l.b16 %v459
    %v476 = vunpack.c.l.b16 %v460
    %v477 = vpack.c.b16 %v470, %v469
    %v478 = vpack.c.b16 %v472, %v471
    %v479 = vpack.c.b16 %v474, %v473
    %v480 = vpack.c.b16 %v476, %v475
    %v486 = vsel %vm198, %v450, 0
    %v489 = vsel %vm198, %v451, 0
    %491 = vmatpush.bf16.msra.mxu0 0
    %492 = vmatpush.bf16.msra.mxu0 0
    %493 = vmatpush.bf16.msra.mxu0 0
    %494 = vmatpush.bf16.msra.mxu0 0
    %495 = vmatpush.bf16.msra.mxu0 %v480
    %496 = vmatpush.bf16.msra.mxu0 %v479
    %497 = vmatpush.bf16.msra.mxu0 %v478
    %498 = vmatpush.bf16.msra.mxu0 %v477
    %499 = vmatmul.bf16.gmra.mxu0 %v486
    %v500 = vpop.f32.mrf.mxu0
    %v501 = vadd.f32 0.0, %v500
    %v502 = vpop.f32.mrf.mxu0
    %v503 = vadd.f32 0.0, %v502
    %504 = vmatmul.bf16.gmra.mxu0 %v489
    %v505 = vpop.f32.mrf.mxu0
    %v506 = vadd.f32 0.0, %v505
    %v507 = vpop.f32.mrf.mxu0
    %v508 = vadd.f32 0.0, %v507
    %509 = vdwg.mxu0
    %v510 = vadd.f32 %v446, %v501
    %v511 = vadd.f32 %v447, %v503
    %v512 = vadd.f32 %v448, %v506
    %v513 = vadd.f32 %v449, %v508
    %514 = vset.pattern.permute.xlu0 5
    %515 = vperm.xlu0 %514, %v105
    %v516 = vpop.permute.xlu0 %515
    %518 = vset.pattern.permute.xlu0 5
    %519 = vperm.xlu0 %518, %v106
    %v520 = vpop.permute.xlu0 %519
    %522 = vset.pattern.permute.xlu0 5
    %523 = vperm.xlu0 %522, %v107
    %v524 = vpop.permute.xlu0 %523
    %526 = vset.pattern.permute.xlu0 5
    %527 = vperm.xlu0 %526, %v108
    %v528 = vpop.permute.xlu0 %527
    %v530 = vmul.f32 %v280, %v516
    %v531 = vmul.f32 %v279, %v520
    %v532 = vmul.f32 %v278, %v524
    %v533 = vmul.f32 %v281, %v528
    %v534 = vpack.c.bf16 %v531, %v530
    %v535 = vpack.c.bf16 %v533, %v532
    %s536 = scalar_lea.vmem %s4, 160
    %v537 = vld [vmem:[%s536] sm:$0xf]
    %v538 = vld [vmem:[%s536 + $0x4] sm:$0xf]
    %v539 = vld [vmem:[%s536 + $0x8] sm:$0xf]
    %v540 = vld [vmem:[%s536 + $0xc] sm:$0xf]
    %v541 = vld [vmem:[%s536 + $0x10] sm:$0xf]
    %v542 = vld [vmem:[%s536 + $0x14] sm:$0xf]
    %v543 = vld [vmem:[%s536 + $0x18] sm:$0xf]
    %v544 = vld [vmem:[%s536 + $0x1c] sm:$0xf]
    %v553 = vunpack.c.l.b16 %v537
    %v554 = vunpack.c.l.b16 %v538
    %v555 = vunpack.c.l.b16 %v539
    %v556 = vunpack.c.l.b16 %v540
    %v557 = vunpack.c.l.b16 %v541
    %v558 = vunpack.c.l.b16 %v542
    %v559 = vunpack.c.l.b16 %v543
    %v560 = vunpack.c.l.b16 %v544
    %v561 = vpack.c.b16 %v554, %v553
    %v562 = vpack.c.b16 %v556, %v555
    %v563 = vpack.c.b16 %v558, %v557
    %v564 = vpack.c.b16 %v560, %v559
    %v570 = vsel %vm198, %v534, 0
    %v573 = vsel %vm198, %v535, 0
    %575 = vmatpush.bf16.msra.mxu0 0
    %576 = vmatpush.bf16.msra.mxu0 0
    %577 = vmatpush.bf16.msra.mxu0 0
    %578 = vmatpush.bf16.msra.mxu0 0
    %579 = vmatpush.bf16.msra.mxu0 %v564
    %580 = vmatpush.bf16.msra.mxu0 %v563
    %581 = vmatpush.bf16.msra.mxu0 %v562
    %582 = vmatpush.bf16.msra.mxu0 %v561
    %583 = vmatmul.bf16.gmra.mxu0 %v570
    %v584 = vpop.f32.mrf.mxu0
    %v585 = vadd.f32 0.0, %v584
    %v586 = vpop.f32.mrf.mxu0
    %v587 = vadd.f32 0.0, %v586
    %588 = vmatmul.bf16.gmra.mxu0 %v573
    %v589 = vpop.f32.mrf.mxu0
    %v590 = vadd.f32 0.0, %v589
    %v591 = vpop.f32.mrf.mxu0
    %v592 = vadd.f32 0.0, %v591
    %593 = vdwg.mxu0
    %v594 = vadd.f32 %v510, %v585
    %v595 = vadd.f32 %v511, %v587
    %v596 = vadd.f32 %v512, %v590
    %v597 = vadd.f32 %v513, %v592
    %598 = vset.pattern.permute.xlu0 6
    %599 = vperm.xlu0 %598, %v105
    %v600 = vpop.permute.xlu0 %599
    %602 = vset.pattern.permute.xlu0 6
    %603 = vperm.xlu0 %602, %v106
    %v604 = vpop.permute.xlu0 %603
    %606 = vset.pattern.permute.xlu0 6
    %607 = vperm.xlu0 %606, %v107
    %v608 = vpop.permute.xlu0 %607
    %610 = vset.pattern.permute.xlu0 6
    %611 = vperm.xlu0 %610, %v108
    %v612 = vpop.permute.xlu0 %611
    %v614 = vmul.f32 %v103, %v600
    %v615 = vmul.f32 %v102, %v604
    %v616 = vmul.f32 %v101, %v608
    %v617 = vmul.f32 %v104, %v612
    %v618 = vpack.c.bf16 %v615, %v614
    %v619 = vpack.c.bf16 %v617, %v616
    %s620 = scalar_lea.vmem %s4, 192
    %v621 = vld [vmem:[%s620] sm:$0xf]
    %v622 = vld [vmem:[%s620 + $0x4] sm:$0xf]
    %v623 = vld [vmem:[%s620 + $0x8] sm:$0xf]
    %v624 = vld [vmem:[%s620 + $0xc] sm:$0xf]
    %v625 = vld [vmem:[%s620 + $0x10] sm:$0xf]
    %v626 = vld [vmem:[%s620 + $0x14] sm:$0xf]
    %v627 = vld [vmem:[%s620 + $0x18] sm:$0xf]
    %v628 = vld [vmem:[%s620 + $0x1c] sm:$0xf]
    %v637 = vunpack.c.l.b16 %v621
    %v638 = vunpack.c.l.b16 %v622
    %v639 = vunpack.c.l.b16 %v623
    %v640 = vunpack.c.l.b16 %v624
    %v641 = vunpack.c.l.b16 %v625
    %v642 = vunpack.c.l.b16 %v626
    %v643 = vunpack.c.l.b16 %v627
    %v644 = vunpack.c.l.b16 %v628
    %v645 = vpack.c.b16 %v638, %v637
    %v646 = vpack.c.b16 %v640, %v639
    %v647 = vpack.c.b16 %v642, %v641
    %v648 = vpack.c.b16 %v644, %v643
    %v654 = vsel %vm198, %v618, 0
    %v657 = vsel %vm198, %v619, 0
    %659 = vmatpush.bf16.msra.mxu0 0
    %660 = vmatpush.bf16.msra.mxu0 0
    %661 = vmatpush.bf16.msra.mxu0 0
    %662 = vmatpush.bf16.msra.mxu0 0
    %663 = vmatpush.bf16.msra.mxu0 %v648
    %664 = vmatpush.bf16.msra.mxu0 %v647
    %665 = vmatpush.bf16.msra.mxu0 %v646
    %666 = vmatpush.bf16.msra.mxu0 %v645
    %667 = vmatmul.bf16.gmra.mxu0 %v654
    %v668 = vpop.f32.mrf.mxu0
    %v669 = vadd.f32 0.0, %v668
    %v670 = vpop.f32.mrf.mxu0
    %v671 = vadd.f32 0.0, %v670
    %672 = vmatmul.bf16.gmra.mxu0 %v657
    %v673 = vpop.f32.mrf.mxu0
    %v674 = vadd.f32 0.0, %v673
    %v675 = vpop.f32.mrf.mxu0
    %v676 = vadd.f32 0.0, %v675
    %677 = vdwg.mxu0
    %v678 = vadd.f32 %v594, %v669
    %v679 = vadd.f32 %v595, %v671
    %v680 = vadd.f32 %v596, %v674
    %v681 = vadd.f32 %v597, %v676
    %682 = vset.pattern.permute.xlu0 7
    %683 = vperm.xlu0 %682, %v105
    %v684 = vpop.permute.xlu0 %683
    %686 = vset.pattern.permute.xlu0 7
    %687 = vperm.xlu0 %686, %v106
    %v688 = vpop.permute.xlu0 %687
    %690 = vset.pattern.permute.xlu0 7
    %691 = vperm.xlu0 %690, %v107
    %v692 = vpop.permute.xlu0 %691
    %694 = vset.pattern.permute.xlu0 7
    %695 = vperm.xlu0 %694, %v108
    %v696 = vpop.permute.xlu0 %695
    %v698 = vmul.f32 %v86, %v684
    %v699 = vmul.f32 %v89, %v688
    %v700 = vmul.f32 %v92, %v692
    %v701 = vmul.f32 %v83, %v696
    %v702 = vpack.c.bf16 %v699, %v698
    %v703 = vpack.c.bf16 %v701, %v700
    %s704 = scalar_lea.vmem %s4, 224
    %v705 = vld [vmem:[%s704] sm:$0xf]
    %v706 = vld [vmem:[%s704 + $0x4] sm:$0xf]
    %v707 = vld [vmem:[%s704 + $0x8] sm:$0xf]
    %v708 = vld [vmem:[%s704 + $0xc] sm:$0xf]
    %v709 = vld [vmem:[%s704 + $0x10] sm:$0xf]
    %v710 = vld [vmem:[%s704 + $0x14] sm:$0xf]
    %v711 = vld [vmem:[%s704 + $0x18] sm:$0xf]
    %v712 = vld [vmem:[%s704 + $0x1c] sm:$0xf]
    %v721 = vunpack.c.l.b16 %v705
    %v722 = vunpack.c.l.b16 %v706
    %v723 = vunpack.c.l.b16 %v707
    %v724 = vunpack.c.l.b16 %v708
    %v725 = vunpack.c.l.b16 %v709
    %v726 = vunpack.c.l.b16 %v710
    %v727 = vunpack.c.l.b16 %v711
    %v728 = vunpack.c.l.b16 %v712
    %v729 = vpack.c.b16 %v722, %v721
    %v730 = vpack.c.b16 %v724, %v723
    %v731 = vpack.c.b16 %v726, %v725
    %v732 = vpack.c.b16 %v728, %v727
    %v738 = vsel %vm198, %v702, 0
    %v741 = vsel %vm198, %v703, 0
    %743 = vmatpush.bf16.msra.mxu0 0
    %744 = vmatpush.bf16.msra.mxu0 0
    %745 = vmatpush.bf16.msra.mxu0 0
    %746 = vmatpush.bf16.msra.mxu0 0
    %747 = vmatpush.bf16.msra.mxu0 %v732
    %748 = vmatpush.bf16.msra.mxu0 %v731
    %749 = vmatpush.bf16.msra.mxu0 %v730
    %750 = vmatpush.bf16.msra.mxu0 %v729
    %751 = vmatmul.bf16.gmra.mxu0 %v738
    %v752 = vpop.f32.mrf.mxu0
    %v753 = vadd.f32 0.0, %v752
    %v754 = vpop.f32.mrf.mxu0
    %v755 = vadd.f32 0.0, %v754
    %756 = vmatmul.bf16.gmra.mxu0 %v741
    %v757 = vpop.f32.mrf.mxu0
    %v758 = vadd.f32 0.0, %v757
    %v759 = vpop.f32.mrf.mxu0
    %v760 = vadd.f32 0.0, %v759
    %761 = vdwg.mxu0
    %v762 = vadd.f32 %v678, %v753
    %v763 = vadd.f32 %v679, %v755
    %v764 = vadd.f32 %v680, %v758
    %v765 = vadd.f32 %v681, %v760
    %766 = vset.pattern.permute.xlu0 8
    %767 = vperm.xlu0 %766, %v105
    %v768 = vpop.permute.xlu0 %767
    %770 = vset.pattern.permute.xlu0 8
    %771 = vperm.xlu0 %770, %v106
    %v772 = vpop.permute.xlu0 %771
    %774 = vset.pattern.permute.xlu0 8
    %775 = vperm.xlu0 %774, %v107
    %v776 = vpop.permute.xlu0 %775
    %778 = vset.pattern.permute.xlu0 8
    %779 = vperm.xlu0 %778, %v108
    %v780 = vpop.permute.xlu0 %779
    %v782 = vmul.f32 %v279, %v768
    %v783 = vmul.f32 %v278, %v772
    %v784 = vmul.f32 %v281, %v776
    %v785 = vmul.f32 %v280, %v780
    %v786 = vpack.c.bf16 %v783, %v782
    %v787 = vpack.c.bf16 %v785, %v784
    %s788 = scalar_lea.vmem %s4, 256
    %v789 = vld [vmem:[%s788] sm:$0xf]
    %v790 = vld [vmem:[%s788 + $0x4] sm:$0xf]
    %v791 = vld [vmem:[%s788 + $0x8] sm:$0xf]
    %v792 = vld [vmem:[%s788 + $0xc] sm:$0xf]
    %v793 = vld [vmem:[%s788 + $0x10] sm:$0xf]
    %v794 = vld [vmem:[%s788 + $0x14] sm:$0xf]
    %v795 = vld [vmem:[%s788 + $0x18] sm:$0xf]
    %v796 = vld [vmem:[%s788 + $0x1c] sm:$0xf]
    %v805 = vunpack.c.l.b16 %v789
    %v806 = vunpack.c.l.b16 %v790
    %v807 = vunpack.c.l.b16 %v791
    %v808 = vunpack.c.l.b16 %v792
    %v809 = vunpack.c.l.b16 %v793
    %v810 = vunpack.c.l.b16 %v794
    %v811 = vunpack.c.l.b16 %v795
    %v812 = vunpack.c.l.b16 %v796
    %v813 = vpack.c.b16 %v806, %v805
    %v814 = vpack.c.b16 %v808, %v807
    %v815 = vpack.c.b16 %v810, %v809
    %v816 = vpack.c.b16 %v812, %v811
    %v822 = vsel %vm198, %v786, 0
    %v825 = vsel %vm198, %v787, 0
    %827 = vmatpush.bf16.msra.mxu0 0
    %828 = vmatpush.bf16.msra.mxu0 0
    %829 = vmatpush.bf16.msra.mxu0 0
    %830 = vmatpush.bf16.msra.mxu0 0
    %831 = vmatpush.bf16.msra.mxu0 %v816
    %832 = vmatpush.bf16.msra.mxu0 %v815
    %833 = vmatpush.bf16.msra.mxu0 %v814
    %834 = vmatpush.bf16.msra.mxu0 %v813
    %835 = vmatmul.bf16.gmra.mxu0 %v822
    %v836 = vpop.f32.mrf.mxu0
    %v837 = vadd.f32 0.0, %v836
    %v838 = vpop.f32.mrf.mxu0
    %v839 = vadd.f32 0.0, %v838
    %840 = vmatmul.bf16.gmra.mxu0 %v825
    %v841 = vpop.f32.mrf.mxu0
    %v842 = vadd.f32 0.0, %v841
    %v843 = vpop.f32.mrf.mxu0
    %v844 = vadd.f32 0.0, %v843
    %845 = vdwg.mxu0
    %v846 = vadd.f32 %v762, %v837
    %v847 = vadd.f32 %v763, %v839
    %v848 = vadd.f32 %v764, %v842
    %v849 = vadd.f32 %v765, %v844
    %v850 = vld [vmem:[%s5] sm:$0x1]
    %v852 = vperm.slane %v850, 0
    %v854 = vadd.f32 %v846, %v852
    %v855 = vadd.f32 %v847, %v852
    %v856 = vadd.f32 %v848, %v852
    %v857 = vadd.f32 %v849, %v852
    %v858 = vmax.f32 %v854, 0.0
    %v859 = vmax.f32 %v855, 0.0
    %v860 = vmax.f32 %v856, 0.0
    %v861 = vmax.f32 %v857, 0.0
    %v862 = vpack.c.bf16 %v858, %v858
    %v863 = vld [vmem:[%s6] sm:$0xf]
    %v864 = vld [vmem:[%s6 + $0x4] sm:$0xf]
    %v865 = vld [vmem:[%s6 + $0x8] sm:$0xf]
    %v866 = vld [vmem:[%s6 + $0xc] sm:$0xf]
    %v867 = vld [vmem:[%s6 + $0x10] sm:$0xf]
    %v868 = vld [vmem:[%s6 + $0x14] sm:$0xf]
    %v869 = vld [vmem:[%s6 + $0x18] sm:$0xf]
    %v870 = vld [vmem:[%s6 + $0x1c] sm:$0xf]
    %s871 = scalar_lea.vmem %s6, 32
    %v872 = vld [vmem:[%s871] sm:$0xf]
    %v873 = vld [vmem:[%s871 + $0x4] sm:$0xf]
    %v874 = vld [vmem:[%s871 + $0x8] sm:$0xf]
    %v875 = vld [vmem:[%s871 + $0xc] sm:$0xf]
    %v876 = vld [vmem:[%s871 + $0x10] sm:$0xf]
    %v877 = vld [vmem:[%s871 + $0x14] sm:$0xf]
    %v878 = vld [vmem:[%s871 + $0x18] sm:$0xf]
    %v879 = vld [vmem:[%s871 + $0x1c] sm:$0xf]
    %v881 = vrot.slane %v862, 1
    %v890 = vunpack.c.l.b16 %v872
    %v891 = vunpack.c.l.b16 %v873
    %v892 = vunpack.c.l.b16 %v874
    %v893 = vunpack.c.l.b16 %v875
    %v894 = vunpack.c.l.b16 %v876
    %v895 = vunpack.c.l.b16 %v877
    %v896 = vunpack.c.l.b16 %v878
    %v897 = vunpack.c.l.b16 %v879
    %v898 = vpack.c.b16 %v891, %v890
    %v899 = vpack.c.b16 %v893, %v892
    %v900 = vpack.c.b16 %v895, %v894
    %v901 = vpack.c.b16 %v897, %v896
    %v907 = vsel %vm198, %v881, 0
    %909 = vmatpush.bf16.msra.mxu0 0
    %910 = vmatpush.bf16.msra.mxu0 0
    %911 = vmatpush.bf16.msra.mxu0 0
    %912 = vmatpush.bf16.msra.mxu0 0
    %913 = vmatpush.bf16.msra.mxu0 %v901
    %914 = vmatpush.bf16.msra.mxu0 %v900
    %915 = vmatpush.bf16.msra.mxu0 %v899
    %916 = vmatpush.bf16.msra.mxu0 %v898
    %917 = vmatmul.bf16.gmra.mxu0 %v907
    %v918 = vpop.f32.mrf.mxu0
    %v919 = vadd.f32 0.0, %v918
    %v920 = vpop.f32.mrf.mxu0
    %921 = vdwg.mxu0
    %v930 = vunpack.c.l.b16 %v863
    %v931 = vunpack.c.l.b16 %v864
    %v932 = vunpack.c.l.b16 %v865
    %v933 = vunpack.c.l.b16 %v866
    %v934 = vunpack.c.l.b16 %v867
    %v935 = vunpack.c.l.b16 %v868
    %v936 = vunpack.c.l.b16 %v869
    %v937 = vunpack.c.l.b16 %v870
    %v938 = vpack.c.b16 %v931, %v930
    %v939 = vpack.c.b16 %v933, %v932
    %v940 = vpack.c.b16 %v935, %v934
    %v941 = vpack.c.b16 %v937, %v936
    %v947 = vsel %vm198, %v862, 0
    %949 = vmatpush.bf16.msra.mxu0 0
    %950 = vmatpush.bf16.msra.mxu0 0
    %951 = vmatpush.bf16.msra.mxu0 0
    %952 = vmatpush.bf16.msra.mxu0 0
    %953 = vmatpush.bf16.msra.mxu0 %v941
    %954 = vmatpush.bf16.msra.mxu0 %v940
    %955 = vmatpush.bf16.msra.mxu0 %v939
    %956 = vmatpush.bf16.msra.mxu0 %v938
    %957 = vmatmul.bf16.gmra.mxu0 %v947
    %v958 = vpop.f32.mrf.mxu0
    %v959 = vadd.f32 %v919, %v958
    %v960 = vpop.f32.mrf.mxu0
    %961 = vdwg.mxu0
    %s962 = scalar_lea.vmem %s6, 64
    %v963 = vld [vmem:[%s962] sm:$0xf]
    %v964 = vld [vmem:[%s962 + $0x4] sm:$0xf]
    %v965 = vld [vmem:[%s962 + $0x8] sm:$0xf]
    %v966 = vld [vmem:[%s962 + $0xc] sm:$0xf]
    %v967 = vld [vmem:[%s962 + $0x10] sm:$0xf]
    %v968 = vld [vmem:[%s962 + $0x14] sm:$0xf]
    %v969 = vld [vmem:[%s962 + $0x18] sm:$0xf]
    %v970 = vld [vmem:[%s962 + $0x1c] sm:$0xf]
    %v971 = vrot.slane %v862, 2
    %v980 = vunpack.c.l.b16 %v963
    %v981 = vunpack.c.l.b16 %v964
    %v982 = vunpack.c.l.b16 %v965
    %v983 = vunpack.c.l.b16 %v966
    %v984 = vunpack.c.l.b16 %v967
    %v985 = vunpack.c.l.b16 %v968
    %v986 = vunpack.c.l.b16 %v969
    %v987 = vunpack.c.l.b16 %v970
    %v988 = vpack.c.b16 %v981, %v980
    %v989 = vpack.c.b16 %v983, %v982
    %v990 = vpack.c.b16 %v985, %v984
    %v991 = vpack.c.b16 %v987, %v986
    %v997 = vsel %vm198, %v971, 0
    %999 = vmatpush.bf16.msra.mxu0 0
    %1000 = vmatpush.bf16.msra.mxu0 0
    %1001 = vmatpush.bf16.msra.mxu0 0
    %1002 = vmatpush.bf16.msra.mxu0 0
    %1003 = vmatpush.bf16.msra.mxu0 %v991
    %1004 = vmatpush.bf16.msra.mxu0 %v990
    %1005 = vmatpush.bf16.msra.mxu0 %v989
    %1006 = vmatpush.bf16.msra.mxu0 %v988
    %1007 = vmatmul.bf16.gmra.mxu0 %v997
    %v1008 = vpop.f32.mrf.mxu0
    %v1009 = vadd.f32 0.0, %v1008
    %v1010 = vpop.f32.mrf.mxu0
    %1011 = vdwg.mxu0
    %v1012 = vadd.f32 %v959, %v1009
    %s1013 = scalar_lea.vmem %s6, 96
    %v1014 = vld [vmem:[%s1013] sm:$0xf]
    %v1015 = vld [vmem:[%s1013 + $0x4] sm:$0xf]
    %v1016 = vld [vmem:[%s1013 + $0x8] sm:$0xf]
    %v1017 = vld [vmem:[%s1013 + $0xc] sm:$0xf]
    %v1018 = vld [vmem:[%s1013 + $0x10] sm:$0xf]
    %v1019 = vld [vmem:[%s1013 + $0x14] sm:$0xf]
    %v1020 = vld [vmem:[%s1013 + $0x18] sm:$0xf]
    %v1021 = vld [vmem:[%s1013 + $0x1c] sm:$0xf]
    %v1022 = vrot.slane %v862, 3
    %v1031 = vunpack.c.l.b16 %v1014
    %v1032 = vunpack.c.l.b16 %v1015
    %v1033 = vunpack.c.l.b16 %v1016
    %v1034 = vunpack.c.l.b16 %v1017
    %v1035 = vunpack.c.l.b16 %v1018
    %v1036 = vunpack.c.l.b16 %v1019
    %v1037 = vunpack.c.l.b16 %v1020
    %v1038 = vunpack.c.l.b16 %v1021
    %v1039 = vpack.c.b16 %v1032, %v1031
    %v1040 = vpack.c.b16 %v1034, %v1033
    %v1041 = vpack.c.b16 %v1036, %v1035
    %v1042 = vpack.c.b16 %v1038, %v1037
    %v1048 = vsel %vm198, %v1022, 0
    %1050 = vmatpush.bf16.msra.mxu0 0
    %1051 = vmatpush.bf16.msra.mxu0 0
    %1052 = vmatpush.bf16.msra.mxu0 0
    %1053 = vmatpush.bf16.msra.mxu0 0
    %1054 = vmatpush.bf16.msra.mxu0 %v1042
    %1055 = vmatpush.bf16.msra.mxu0 %v1041
    %1056 = vmatpush.bf16.msra.mxu0 %v1040
    %1057 = vmatpush.bf16.msra.mxu0 %v1039
    %1058 = vmatmul.bf16.gmra.mxu0 %v1048
    %v1059 = vpop.f32.mrf.mxu0
    %v1060 = vadd.f32 0.0, %v1059
    %v1061 = vpop.f32.mrf.mxu0
    %1062 = vdwg.mxu0
    %v1063 = vadd.f32 %v1012, %v1060
    %v1064 = vpack.c.bf16 %v859, %v859
    %s1065 = scalar_lea.vmem %s6, 128
    %v1066 = vld [vmem:[%s1065] sm:$0xf]
    %v1067 = vld [vmem:[%s1065 + $0x4] sm:$0xf]
    %v1068 = vld [vmem:[%s1065 + $0x8] sm:$0xf]
    %v1069 = vld [vmem:[%s1065 + $0xc] sm:$0xf]
    %v1070 = vld [vmem:[%s1065 + $0x10] sm:$0xf]
    %v1071 = vld [vmem:[%s1065 + $0x14] sm:$0xf]
    %v1072 = vld [vmem:[%s1065 + $0x18] sm:$0xf]
    %v1073 = vld [vmem:[%s1065 + $0x1c] sm:$0xf]
    %v1082 = vunpack.c.l.b16 %v1066
    %v1083 = vunpack.c.l.b16 %v1067
    %v1084 = vunpack.c.l.b16 %v1068
    %v1085 = vunpack.c.l.b16 %v1069
    %v1086 = vunpack.c.l.b16 %v1070
    %v1087 = vunpack.c.l.b16 %v1071
    %v1088 = vunpack.c.l.b16 %v1072
    %v1089 = vunpack.c.l.b16 %v1073
    %v1090 = vpack.c.b16 %v1083, %v1082
    %v1091 = vpack.c.b16 %v1085, %v1084
    %v1092 = vpack.c.b16 %v1087, %v1086
    %v1093 = vpack.c.b16 %v1089, %v1088
    %v1099 = vsel %vm198, %v1064, 0
    %1101 = vmatpush.bf16.msra.mxu0 0
    %1102 = vmatpush.bf16.msra.mxu0 0
    %1103 = vmatpush.bf16.msra.mxu0 0
    %1104 = vmatpush.bf16.msra.mxu0 0
    %1105 = vmatpush.bf16.msra.mxu0 %v1093
    %1106 = vmatpush.bf16.msra.mxu0 %v1092
    %1107 = vmatpush.bf16.msra.mxu0 %v1091
    %1108 = vmatpush.bf16.msra.mxu0 %v1090
    %1109 = vmatmul.bf16.gmra.mxu0 %v1099
    %v1110 = vpop.f32.mrf.mxu0
    %v1111 = vadd.f32 0.0, %v1110
    %v1112 = vpop.f32.mrf.mxu0
    %1113 = vdwg.mxu0
    %v1114 = vadd.f32 %v1063, %v1111
    %s1115 = scalar_lea.vmem %s6, 160
    %v1116 = vld [vmem:[%s1115] sm:$0xf]
    %v1117 = vld [vmem:[%s1115 + $0x4] sm:$0xf]
    %v1118 = vld [vmem:[%s1115 + $0x8] sm:$0xf]
    %v1119 = vld [vmem:[%s1115 + $0xc] sm:$0xf]
    %v1120 = vld [vmem:[%s1115 + $0x10] sm:$0xf]
    %v1121 = vld [vmem:[%s1115 + $0x14] sm:$0xf]
    %v1122 = vld [vmem:[%s1115 + $0x18] sm:$0xf]
    %v1123 = vld [vmem:[%s1115 + $0x1c] sm:$0xf]
    %v1125 = vrot.slane %v1064, 1
    %v1134 = vunpack.c.l.b16 %v1116
    %v1135 = vunpack.c.l.b16 %v1117
    %v1136 = vunpack.c.l.b16 %v1118
    %v1137 = vunpack.c.l.b16 %v1119
    %v1138 = vunpack.c.l.b16 %v1120
    %v1139 = vunpack.c.l.b16 %v1121
    %v1140 = vunpack.c.l.b16 %v1122
    %v1141 = vunpack.c.l.b16 %v1123
    %v1142 = vpack.c.b16 %v1135, %v1134
    %v1143 = vpack.c.b16 %v1137, %v1136
    %v1144 = vpack.c.b16 %v1139, %v1138
    %v1145 = vpack.c.b16 %v1141, %v1140
    %v1151 = vsel %vm198, %v1125, 0
    %1153 = vmatpush.bf16.msra.mxu0 0
    %1154 = vmatpush.bf16.msra.mxu0 0
    %1155 = vmatpush.bf16.msra.mxu0 0
    %1156 = vmatpush.bf16.msra.mxu0 0
    %1157 = vmatpush.bf16.msra.mxu0 %v1145
    %1158 = vmatpush.bf16.msra.mxu0 %v1144
    %1159 = vmatpush.bf16.msra.mxu0 %v1143
    %1160 = vmatpush.bf16.msra.mxu0 %v1142
    %1161 = vmatmul.bf16.gmra.mxu0 %v1151
    %v1162 = vpop.f32.mrf.mxu0
    %v1163 = vadd.f32 0.0, %v1162
    %v1164 = vpop.f32.mrf.mxu0
    %1165 = vdwg.mxu0
    %v1166 = vadd.f32 %v1114, %v1163
    %s1167 = scalar_lea.vmem %s6, 192
    %v1168 = vld [vmem:[%s1167] sm:$0xf]
    %v1169 = vld [vmem:[%s1167 + $0x4] sm:$0xf]
    %v1170 = vld [vmem:[%s1167 + $0x8] sm:$0xf]
    %v1171 = vld [vmem:[%s1167 + $0xc] sm:$0xf]
    %v1172 = vld [vmem:[%s1167 + $0x10] sm:$0xf]
    %v1173 = vld [vmem:[%s1167 + $0x14] sm:$0xf]
    %v1174 = vld [vmem:[%s1167 + $0x18] sm:$0xf]
    %v1175 = vld [vmem:[%s1167 + $0x1c] sm:$0xf]
    %v1176 = vrot.slane %v1064, 2
    %v1185 = vunpack.c.l.b16 %v1168
    %v1186 = vunpack.c.l.b16 %v1169
    %v1187 = vunpack.c.l.b16 %v1170
    %v1188 = vunpack.c.l.b16 %v1171
    %v1189 = vunpack.c.l.b16 %v1172
    %v1190 = vunpack.c.l.b16 %v1173
    %v1191 = vunpack.c.l.b16 %v1174
    %v1192 = vunpack.c.l.b16 %v1175
    %v1193 = vpack.c.b16 %v1186, %v1185
    %v1194 = vpack.c.b16 %v1188, %v1187
    %v1195 = vpack.c.b16 %v1190, %v1189
    %v1196 = vpack.c.b16 %v1192, %v1191
    %v1202 = vsel %vm198, %v1176, 0
    %1204 = vmatpush.bf16.msra.mxu0 0
    %1205 = vmatpush.bf16.msra.mxu0 0
    %1206 = vmatpush.bf16.msra.mxu0 0
    %1207 = vmatpush.bf16.msra.mxu0 0
    %1208 = vmatpush.bf16.msra.mxu0 %v1196
    %1209 = vmatpush.bf16.msra.mxu0 %v1195
    %1210 = vmatpush.bf16.msra.mxu0 %v1194
    %1211 = vmatpush.bf16.msra.mxu0 %v1193
    %1212 = vmatmul.bf16.gmra.mxu0 %v1202
    %v1213 = vpop.f32.mrf.mxu0
    %v1214 = vadd.f32 0.0, %v1213
    %v1215 = vpop.f32.mrf.mxu0
    %1216 = vdwg.mxu0
    %v1217 = vadd.f32 %v1166, %v1214
    %s1218 = scalar_lea.vmem %s6, 224
    %v1219 = vld [vmem:[%s1218] sm:$0xf]
    %v1220 = vld [vmem:[%s1218 + $0x4] sm:$0xf]
    %v1221 = vld [vmem:[%s1218 + $0x8] sm:$0xf]
    %v1222 = vld [vmem:[%s1218 + $0xc] sm:$0xf]
    %v1223 = vld [vmem:[%s1218 + $0x10] sm:$0xf]
    %v1224 = vld [vmem:[%s1218 + $0x14] sm:$0xf]
    %v1225 = vld [vmem:[%s1218 + $0x18] sm:$0xf]
    %v1226 = vld [vmem:[%s1218 + $0x1c] sm:$0xf]
    %v1227 = vrot.slane %v1064, 3
    %v1236 = vunpack.c.l.b16 %v1219
    %v1237 = vunpack.c.l.b16 %v1220
    %v1238 = vunpack.c.l.b16 %v1221
    %v1239 = vunpack.c.l.b16 %v1222
    %v1240 = vunpack.c.l.b16 %v1223
    %v1241 = vunpack.c.l.b16 %v1224
    %v1242 = vunpack.c.l.b16 %v1225
    %v1243 = vunpack.c.l.b16 %v1226
    %v1244 = vpack.c.b16 %v1237, %v1236
    %v1245 = vpack.c.b16 %v1239, %v1238
    %v1246 = vpack.c.b16 %v1241, %v1240
    %v1247 = vpack.c.b16 %v1243, %v1242
    %v1253 = vsel %vm198, %v1227, 0
    %1255 = vmatpush.bf16.msra.mxu0 0
    %1256 = vmatpush.bf16.msra.mxu0 0
    %1257 = vmatpush.bf16.msra.mxu0 0
    %1258 = vmatpush.bf16.msra.mxu0 0
    %1259 = vmatpush.bf16.msra.mxu0 %v1247
    %1260 = vmatpush.bf16.msra.mxu0 %v1246
    %1261 = vmatpush.bf16.msra.mxu0 %v1245
    %1262 = vmatpush.bf16.msra.mxu0 %v1244
    %1263 = vmatmul.bf16.gmra.mxu0 %v1253
    %v1264 = vpop.f32.mrf.mxu0
    %v1265 = vadd.f32 0.0, %v1264
    %v1266 = vpop.f32.mrf.mxu0
    %1267 = vdwg.mxu0
    %v1268 = vadd.f32 %v1217, %v1265
    %v1269 = vpack.c.bf16 %v860, %v860
    %s1270 = scalar_lea.vmem %s6, 256
    %v1271 = vld [vmem:[%s1270] sm:$0xf]
    %v1272 = vld [vmem:[%s1270 + $0x4] sm:$0xf]
    %v1273 = vld [vmem:[%s1270 + $0x8] sm:$0xf]
    %v1274 = vld [vmem:[%s1270 + $0xc] sm:$0xf]
    %v1275 = vld [vmem:[%s1270 + $0x10] sm:$0xf]
    %v1276 = vld [vmem:[%s1270 + $0x14] sm:$0xf]
    %v1277 = vld [vmem:[%s1270 + $0x18] sm:$0xf]
    %v1278 = vld [vmem:[%s1270 + $0x1c] sm:$0xf]
    %v1287 = vunpack.c.l.b16 %v1271
    %v1288 = vunpack.c.l.b16 %v1272
    %v1289 = vunpack.c.l.b16 %v1273
    %v1290 = vunpack.c.l.b16 %v1274
    %v1291 = vunpack.c.l.b16 %v1275
    %v1292 = vunpack.c.l.b16 %v1276
    %v1293 = vunpack.c.l.b16 %v1277
    %v1294 = vunpack.c.l.b16 %v1278
    %v1295 = vpack.c.b16 %v1288, %v1287
    %v1296 = vpack.c.b16 %v1290, %v1289
    %v1297 = vpack.c.b16 %v1292, %v1291
    %v1298 = vpack.c.b16 %v1294, %v1293
    %v1304 = vsel %vm198, %v1269, 0
    %1306 = vmatpush.bf16.msra.mxu0 0
    %1307 = vmatpush.bf16.msra.mxu0 0
    %1308 = vmatpush.bf16.msra.mxu0 0
    %1309 = vmatpush.bf16.msra.mxu0 0
    %1310 = vmatpush.bf16.msra.mxu0 %v1298
    %1311 = vmatpush.bf16.msra.mxu0 %v1297
    %1312 = vmatpush.bf16.msra.mxu0 %v1296
    %1313 = vmatpush.bf16.msra.mxu0 %v1295
    %1314 = vmatmul.bf16.gmra.mxu0 %v1304
    %v1315 = vpop.f32.mrf.mxu0
    %v1316 = vadd.f32 0.0, %v1315
    %v1317 = vpop.f32.mrf.mxu0
    %1318 = vdwg.mxu0
    %v1319 = vadd.f32 %v1268, %v1316
    %s1320 = scalar_lea.vmem %s6, 288
    %v1321 = vld [vmem:[%s1320] sm:$0xf]
    %v1322 = vld [vmem:[%s1320 + $0x4] sm:$0xf]
    %v1323 = vld [vmem:[%s1320 + $0x8] sm:$0xf]
    %v1324 = vld [vmem:[%s1320 + $0xc] sm:$0xf]
    %v1325 = vld [vmem:[%s1320 + $0x10] sm:$0xf]
    %v1326 = vld [vmem:[%s1320 + $0x14] sm:$0xf]
    %v1327 = vld [vmem:[%s1320 + $0x18] sm:$0xf]
    %v1328 = vld [vmem:[%s1320 + $0x1c] sm:$0xf]
    %v1330 = vrot.slane %v1269, 1
    %v1339 = vunpack.c.l.b16 %v1321
    %v1340 = vunpack.c.l.b16 %v1322
    %v1341 = vunpack.c.l.b16 %v1323
    %v1342 = vunpack.c.l.b16 %v1324
    %v1343 = vunpack.c.l.b16 %v1325
    %v1344 = vunpack.c.l.b16 %v1326
    %v1345 = vunpack.c.l.b16 %v1327
    %v1346 = vunpack.c.l.b16 %v1328
    %v1347 = vpack.c.b16 %v1340, %v1339
    %v1348 = vpack.c.b16 %v1342, %v1341
    %v1349 = vpack.c.b16 %v1344, %v1343
    %v1350 = vpack.c.b16 %v1346, %v1345
    %v1356 = vsel %vm198, %v1330, 0
    %1358 = vmatpush.bf16.msra.mxu0 0
    %1359 = vmatpush.bf16.msra.mxu0 0
    %1360 = vmatpush.bf16.msra.mxu0 0
    %1361 = vmatpush.bf16.msra.mxu0 0
    %1362 = vmatpush.bf16.msra.mxu0 %v1350
    %1363 = vmatpush.bf16.msra.mxu0 %v1349
    %1364 = vmatpush.bf16.msra.mxu0 %v1348
    %1365 = vmatpush.bf16.msra.mxu0 %v1347
    %1366 = vmatmul.bf16.gmra.mxu0 %v1356
    %v1367 = vpop.f32.mrf.mxu0
    %v1368 = vadd.f32 0.0, %v1367
    %v1369 = vpop.f32.mrf.mxu0
    %1370 = vdwg.mxu0
    %v1371 = vadd.f32 %v1319, %v1368
    %s1372 = scalar_lea.vmem %s6, 320
    %v1373 = vld [vmem:[%s1372] sm:$0xf]
    %v1374 = vld [vmem:[%s1372 + $0x4] sm:$0xf]
    %v1375 = vld [vmem:[%s1372 + $0x8] sm:$0xf]
    %v1376 = vld [vmem:[%s1372 + $0xc] sm:$0xf]
    %v1377 = vld [vmem:[%s1372 + $0x10] sm:$0xf]
    %v1378 = vld [vmem:[%s1372 + $0x14] sm:$0xf]
    %v1379 = vld [vmem:[%s1372 + $0x18] sm:$0xf]
    %v1380 = vld [vmem:[%s1372 + $0x1c] sm:$0xf]
    %v1381 = vrot.slane %v1269, 2
    %v1390 = vunpack.c.l.b16 %v1373
    %v1391 = vunpack.c.l.b16 %v1374
    %v1392 = vunpack.c.l.b16 %v1375
    %v1393 = vunpack.c.l.b16 %v1376
    %v1394 = vunpack.c.l.b16 %v1377
    %v1395 = vunpack.c.l.b16 %v1378
    %v1396 = vunpack.c.l.b16 %v1379
    %v1397 = vunpack.c.l.b16 %v1380
    %v1398 = vpack.c.b16 %v1391, %v1390
    %v1399 = vpack.c.b16 %v1393, %v1392
    %v1400 = vpack.c.b16 %v1395, %v1394
    %v1401 = vpack.c.b16 %v1397, %v1396
    %v1407 = vsel %vm198, %v1381, 0
    %1409 = vmatpush.bf16.msra.mxu0 0
    %1410 = vmatpush.bf16.msra.mxu0 0
    %1411 = vmatpush.bf16.msra.mxu0 0
    %1412 = vmatpush.bf16.msra.mxu0 0
    %1413 = vmatpush.bf16.msra.mxu0 %v1401
    %1414 = vmatpush.bf16.msra.mxu0 %v1400
    %1415 = vmatpush.bf16.msra.mxu0 %v1399
    %1416 = vmatpush.bf16.msra.mxu0 %v1398
    %1417 = vmatmul.bf16.gmra.mxu0 %v1407
    %v1418 = vpop.f32.mrf.mxu0
    %v1419 = vadd.f32 0.0, %v1418
    %v1420 = vpop.f32.mrf.mxu0
    %1421 = vdwg.mxu0
    %v1422 = vadd.f32 %v1371, %v1419
    %s1423 = scalar_lea.vmem %s6, 352
    %v1424 = vld [vmem:[%s1423] sm:$0xf]
    %v1425 = vld [vmem:[%s1423 + $0x4] sm:$0xf]
    %v1426 = vld [vmem:[%s1423 + $0x8] sm:$0xf]
    %v1427 = vld [vmem:[%s1423 + $0xc] sm:$0xf]
    %v1428 = vld [vmem:[%s1423 + $0x10] sm:$0xf]
    %v1429 = vld [vmem:[%s1423 + $0x14] sm:$0xf]
    %v1430 = vld [vmem:[%s1423 + $0x18] sm:$0xf]
    %v1431 = vld [vmem:[%s1423 + $0x1c] sm:$0xf]
    %v1432 = vrot.slane %v1269, 3
    %v1441 = vunpack.c.l.b16 %v1424
    %v1442 = vunpack.c.l.b16 %v1425
    %v1443 = vunpack.c.l.b16 %v1426
    %v1444 = vunpack.c.l.b16 %v1427
    %v1445 = vunpack.c.l.b16 %v1428
    %v1446 = vunpack.c.l.b16 %v1429
    %v1447 = vunpack.c.l.b16 %v1430
    %v1448 = vunpack.c.l.b16 %v1431
    %v1449 = vpack.c.b16 %v1442, %v1441
    %v1450 = vpack.c.b16 %v1444, %v1443
    %v1451 = vpack.c.b16 %v1446, %v1445
    %v1452 = vpack.c.b16 %v1448, %v1447
    %v1458 = vsel %vm198, %v1432, 0
    %1460 = vmatpush.bf16.msra.mxu0 0
    %1461 = vmatpush.bf16.msra.mxu0 0
    %1462 = vmatpush.bf16.msra.mxu0 0
    %1463 = vmatpush.bf16.msra.mxu0 0
    %1464 = vmatpush.bf16.msra.mxu0 %v1452
    %1465 = vmatpush.bf16.msra.mxu0 %v1451
    %1466 = vmatpush.bf16.msra.mxu0 %v1450
    %1467 = vmatpush.bf16.msra.mxu0 %v1449
    %1468 = vmatmul.bf16.gmra.mxu0 %v1458
    %v1469 = vpop.f32.mrf.mxu0
    %v1470 = vadd.f32 0.0, %v1469
    %v1471 = vpop.f32.mrf.mxu0
    %1472 = vdwg.mxu0
    %v1473 = vadd.f32 %v1422, %v1470
    %v1474 = vpack.c.bf16 %v861, %v861
    %s1475 = scalar_lea.vmem %s6, 384
    %v1476 = vld [vmem:[%s1475] sm:$0xf]
    %v1477 = vld [vmem:[%s1475 + $0x4] sm:$0xf]
    %v1478 = vld [vmem:[%s1475 + $0x8] sm:$0xf]
    %v1479 = vld [vmem:[%s1475 + $0xc] sm:$0xf]
    %v1480 = vld [vmem:[%s1475 + $0x10] sm:$0xf]
    %v1481 = vld [vmem:[%s1475 + $0x14] sm:$0xf]
    %v1482 = vld [vmem:[%s1475 + $0x18] sm:$0xf]
    %v1483 = vld [vmem:[%s1475 + $0x1c] sm:$0xf]
    %v1492 = vunpack.c.l.b16 %v1476
    %v1493 = vunpack.c.l.b16 %v1477
    %v1494 = vunpack.c.l.b16 %v1478
    %v1495 = vunpack.c.l.b16 %v1479
    %v1496 = vunpack.c.l.b16 %v1480
    %v1497 = vunpack.c.l.b16 %v1481
    %v1498 = vunpack.c.l.b16 %v1482
    %v1499 = vunpack.c.l.b16 %v1483
    %v1500 = vpack.c.b16 %v1493, %v1492
    %v1501 = vpack.c.b16 %v1495, %v1494
    %v1502 = vpack.c.b16 %v1497, %v1496
    %v1503 = vpack.c.b16 %v1499, %v1498
    %v1509 = vsel %vm198, %v1474, 0
    %1511 = vmatpush.bf16.msra.mxu0 0
    %1512 = vmatpush.bf16.msra.mxu0 0
    %1513 = vmatpush.bf16.msra.mxu0 0
    %1514 = vmatpush.bf16.msra.mxu0 0
    %1515 = vmatpush.bf16.msra.mxu0 %v1503
    %1516 = vmatpush.bf16.msra.mxu0 %v1502
    %1517 = vmatpush.bf16.msra.mxu0 %v1501
    %1518 = vmatpush.bf16.msra.mxu0 %v1500
    %1519 = vmatmul.bf16.gmra.mxu0 %v1509
    %v1520 = vpop.f32.mrf.mxu0
    %v1521 = vadd.f32 0.0, %v1520
    %v1522 = vpop.f32.mrf.mxu0
    %1523 = vdwg.mxu0
    %v1524 = vadd.f32 %v1473, %v1521
    %s1525 = scalar_lea.vmem %s6, 416
    %v1526 = vld [vmem:[%s1525] sm:$0xf]
    %v1527 = vld [vmem:[%s1525 + $0x4] sm:$0xf]
    %v1528 = vld [vmem:[%s1525 + $0x8] sm:$0xf]
    %v1529 = vld [vmem:[%s1525 + $0xc] sm:$0xf]
    %v1530 = vld [vmem:[%s1525 + $0x10] sm:$0xf]
    %v1531 = vld [vmem:[%s1525 + $0x14] sm:$0xf]
    %v1532 = vld [vmem:[%s1525 + $0x18] sm:$0xf]
    %v1533 = vld [vmem:[%s1525 + $0x1c] sm:$0xf]
    %v1535 = vrot.slane %v1474, 1
    %v1544 = vunpack.c.l.b16 %v1526
    %v1545 = vunpack.c.l.b16 %v1527
    %v1546 = vunpack.c.l.b16 %v1528
    %v1547 = vunpack.c.l.b16 %v1529
    %v1548 = vunpack.c.l.b16 %v1530
    %v1549 = vunpack.c.l.b16 %v1531
    %v1550 = vunpack.c.l.b16 %v1532
    %v1551 = vunpack.c.l.b16 %v1533
    %v1552 = vpack.c.b16 %v1545, %v1544
    %v1553 = vpack.c.b16 %v1547, %v1546
    %v1554 = vpack.c.b16 %v1549, %v1548
    %v1555 = vpack.c.b16 %v1551, %v1550
    %v1561 = vsel %vm198, %v1535, 0
    %1563 = vmatpush.bf16.msra.mxu0 0
    %1564 = vmatpush.bf16.msra.mxu0 0
    %1565 = vmatpush.bf16.msra.mxu0 0
    %1566 = vmatpush.bf16.msra.mxu0 0
    %1567 = vmatpush.bf16.msra.mxu0 %v1555
    %1568 = vmatpush.bf16.msra.mxu0 %v1554
    %1569 = vmatpush.bf16.msra.mxu0 %v1553
    %1570 = vmatpush.bf16.msra.mxu0 %v1552
    %1571 = vmatmul.bf16.gmra.mxu0 %v1561
    %v1572 = vpop.f32.mrf.mxu0
    %v1573 = vadd.f32 0.0, %v1572
    %v1574 = vpop.f32.mrf.mxu0
    %1575 = vdwg.mxu0
    %v1576 = vadd.f32 %v1524, %v1573
    %s1577 = scalar_lea.vmem %s6, 448
    %v1578 = vld [vmem:[%s1577] sm:$0xf]
    %v1579 = vld [vmem:[%s1577 + $0x4] sm:$0xf]
    %v1580 = vld [vmem:[%s1577 + $0x8] sm:$0xf]
    %v1581 = vld [vmem:[%s1577 + $0xc] sm:$0xf]
    %v1582 = vld [vmem:[%s1577 + $0x10] sm:$0xf]
    %v1583 = vld [vmem:[%s1577 + $0x14] sm:$0xf]
    %v1584 = vld [vmem:[%s1577 + $0x18] sm:$0xf]
    %v1585 = vld [vmem:[%s1577 + $0x1c] sm:$0xf]
    %v1586 = vrot.slane %v1474, 2
    %v1595 = vunpack.c.l.b16 %v1578
    %v1596 = vunpack.c.l.b16 %v1579
    %v1597 = vunpack.c.l.b16 %v1580
    %v1598 = vunpack.c.l.b16 %v1581
    %v1599 = vunpack.c.l.b16 %v1582
    %v1600 = vunpack.c.l.b16 %v1583
    %v1601 = vunpack.c.l.b16 %v1584
    %v1602 = vunpack.c.l.b16 %v1585
    %v1603 = vpack.c.b16 %v1596, %v1595
    %v1604 = vpack.c.b16 %v1598, %v1597
    %v1605 = vpack.c.b16 %v1600, %v1599
    %v1606 = vpack.c.b16 %v1602, %v1601
    %v1612 = vsel %vm198, %v1586, 0
    %1614 = vmatpush.bf16.msra.mxu0 0
    %1615 = vmatpush.bf16.msra.mxu0 0
    %1616 = vmatpush.bf16.msra.mxu0 0
    %1617 = vmatpush.bf16.msra.mxu0 0
    %1618 = vmatpush.bf16.msra.mxu0 %v1606
    %1619 = vmatpush.bf16.msra.mxu0 %v1605
    %1620 = vmatpush.bf16.msra.mxu0 %v1604
    %1621 = vmatpush.bf16.msra.mxu0 %v1603
    %1622 = vmatmul.bf16.gmra.mxu0 %v1612
    %v1623 = vpop.f32.mrf.mxu0
    %v1624 = vadd.f32 0.0, %v1623
    %v1625 = vpop.f32.mrf.mxu0
    %1626 = vdwg.mxu0
    %v1627 = vadd.f32 %v1576, %v1624
    %s1628 = scalar_lea.vmem %s6, 480
    %v1629 = vld [vmem:[%s1628] sm:$0xf]
    %v1630 = vld [vmem:[%s1628 + $0x4] sm:$0xf]
    %v1631 = vld [vmem:[%s1628 + $0x8] sm:$0xf]
    %v1632 = vld [vmem:[%s1628 + $0xc] sm:$0xf]
    %v1633 = vld [vmem:[%s1628 + $0x10] sm:$0xf]
    %v1634 = vld [vmem:[%s1628 + $0x14] sm:$0xf]
    %v1635 = vld [vmem:[%s1628 + $0x18] sm:$0xf]
    %v1636 = vld [vmem:[%s1628 + $0x1c] sm:$0xf]
    %v1637 = vrot.slane %v1474, 3
    %v1646 = vunpack.c.l.b16 %v1629
    %v1647 = vunpack.c.l.b16 %v1630
    %v1648 = vunpack.c.l.b16 %v1631
    %v1649 = vunpack.c.l.b16 %v1632
    %v1650 = vunpack.c.l.b16 %v1633
    %v1651 = vunpack.c.l.b16 %v1634
    %v1652 = vunpack.c.l.b16 %v1635
    %v1653 = vunpack.c.l.b16 %v1636
    %v1654 = vpack.c.b16 %v1647, %v1646
    %v1655 = vpack.c.b16 %v1649, %v1648
    %v1656 = vpack.c.b16 %v1651, %v1650
    %v1657 = vpack.c.b16 %v1653, %v1652
    %v1663 = vsel %vm198, %v1637, 0
    %1665 = vmatpush.bf16.msra.mxu0 0
    %1666 = vmatpush.bf16.msra.mxu0 0
    %1667 = vmatpush.bf16.msra.mxu0 0
    %1668 = vmatpush.bf16.msra.mxu0 0
    %1669 = vmatpush.bf16.msra.mxu0 %v1657
    %1670 = vmatpush.bf16.msra.mxu0 %v1656
    %1671 = vmatpush.bf16.msra.mxu0 %v1655
    %1672 = vmatpush.bf16.msra.mxu0 %v1654
    %1673 = vmatmul.bf16.gmra.mxu0 %v1663
    %v1674 = vpop.f32.mrf.mxu0
    %v1675 = vadd.f32 0.0, %v1674
    %v1676 = vpop.f32.mrf.mxu0
    %1677 = vdwg.mxu0
    %v1678 = vadd.f32 %v1627, %v1675
    %v1679 = vld [vmem:[%s7] sm:$0x1]
    %v1681 = vperm.slane %v1679, 0
    %v1683 = vadd.f32 %v1678, %v1681
    %v1684 = vmax.f32 %v1683, 0.0
    %v1685 = vld [vmem:[%s8] sm:$0xff]
    %v1686 = vld [vmem:[%s8 + $0x8] sm:$0xff]
    %v1687 = vld [vmem:[%s8 + $0x10] sm:$0xff]
    %v1688 = vld [vmem:[%s8 + $0x18] sm:$0xff]
    %v1689 = vld [vmem:[%s8 + $0x20] sm:$0xff]
    %v1690 = vld [vmem:[%s8 + $0x28] sm:$0xff]
    %v1691 = vld [vmem:[%s8 + $0x30] sm:$0xff]
    %v1692 = vld [vmem:[%s8 + $0x38] sm:$0xff]
    %v1693 = vld [vmem:[%s9] sm:$0x1]
    %v1695 = vperm.slane %v1693, 0
    %v1698 = vsel %vm198, %v1684, 0
    %1700 = vmatpush.msra.mxu0 0.0
    %1701 = vmatpush.msra.mxu0 0.0
    %1702 = vmatpush.msra.mxu0 0.0
    %1703 = vmatpush.msra.mxu0 0.0
    %1704 = vmatpush.msra.mxu0 0.0
    %1705 = vmatpush.msra.mxu0 0.0
    %1706 = vmatpush.msra.mxu0 0.0
    %1707 = vmatpush.msra.mxu0 0.0
    %1708 = vmatpush.msra.mxu0 %v1692
    %1709 = vmatpush.msra.mxu0 %v1691
    %1710 = vmatpush.msra.mxu0 %v1690
    %1711 = vmatpush.msra.mxu0 %v1689
    %1712 = vmatpush.msra.mxu0 %v1688
    %1713 = vmatpush.msra.mxu0 %v1687
    %1714 = vmatpush.msra.mxu0 %v1686
    %1715 = vmatpush.msra.mxu0 %v1685
    %1716 = vmatmul.f32.gmra.mxu0 %v1698
    %v1717 = vpop.f32.mrf.mxu0
    %v1718 = vadd.f32 %v1695, %v1717
    %1719 = vdwg.mxu0
    %vm1720 = vcmask 25600
    %v1721 = vsel %vm1720, %v1718, -inf
    %1722 = vmax.xlane.f32.xlu0 %v1721
    %v1723 = vpop.xlane.xlu0 %1722
    %v1724 = vsub.f32 %v1718, %v1723
    %v1725 = vmul.f32 %v1724, 1.442695
    %v1726 = vpow.pop %v1725
    %v1727 = vsel %vm1720, %v1726, 0.0
    %1728 = vadd.xlane.f32.xlu0 %v1727
    %v1729 = vpop.xlane.xlu0 %1728
    %v1730 = vrcp.pop %v1729
    %v1731 = vmul.f32 %v1726, %v1730
    %1732 = vst.msk [vmem:[#allocation2] sm:$0x3] %vm1720, %v1731
    // Predicated region
    $region42: #{cnn_net_no_first_relu.1} parent=1 // pred_check
      _
    $region43: #{cnn_net_no_first_relu.1} parent=1 // pred_check_branch
      %1734 = sbr.rel (0) target = $region45
    $region44: #{cnn_net_no_first_relu.1} parent=1 // pred_region
      %1736 = vsyncadd [#allocation3], 0
      %s1738 = sshll.u32 [#allocation2], 4
      %s1739 = int_to_ptr.vmem [resolvable:$true] %s1738
      %s1740 = sshll.u32 %s10, 4
      %s1741 = int_to_ptr.hbm [resolvable:$true] %s1740
      %1743 = dma.vmem_to_hbm [thread:$0]  %s1739, 32, %s1741, [#allocation3]
    $region45: #{cnn_net_no_first_relu.1} parent=1 // pred_fallthru
      _
    // Predicated region
    $region46: #{cnn_net_no_first_relu.1} parent=1 // pred_check
      _
    $region47: #{cnn_net_no_first_relu.1} parent=1 // pred_check_branch
      %1745 = sbr.rel (0) target = $region49
    $region48: #{cnn_net_no_first_relu.1} parent=1 // pred_region
      %1747 = dma.done [#allocation3], 32
    $region49: #{cnn_net_no_first_relu.1} parent=1 // pred_fallthru
      _
    %1748 = vsyncpa [#allocation3], 1

</llo_original>
